<compile_context>
chip_gen: v7x
topology: tpu7x:2x2x1
jax: 0.10.0
libtpu: 0.0.40
codegen_flags: <defaults>
</compile_context>

<pallas_src>
import jax
import jax.numpy as jnp
import numpy as np
from jax.experimental import pallas as pl
from jax.experimental.pallas import tpu as pltpu

# ---- packed parameter indices (same layout as the original parameterization) --
(I_ENC, I_FCO, I_FCA, I_FCQ, I_FCA_,
 I_WSO, I_WSA, I_WSQ, I_WSO_, I_WSA_, I_WSQ_,
 I_WGO, I_WGA, I_WGQ) = range(14)
(J_FCO_, J_FCQ_, J_RESA, J_RESQ, J_RESO) = range(5)
N_SQ, N_WIDE = 14, 5


def _graph_reasoning_kernel(d_ref, wenc_ref, wsm_ref, we_ref, ws_ref, wg_ref,
                            wr_ref, b_ref, out_ref):
    Bt, S, FP = d_ref.shape
    M = Bt * S

    D = d_ref[...].reshape(M, FP)      # [x | o | q | 0] slab for this block
    b = b_ref[...]                     # (6, FP) packed biases

    def mm(a, w):
        return jnp.dot(a, w, preferred_element_type=jnp.float32)

    def softmax_seq(z):
        # softmax over seq_len (torch dim=-2), independently per lane/feature
        z3 = z.reshape(Bt, S, FP)
        m = jnp.max(z3, axis=1, keepdims=True)
        e = jnp.exp(z3 - m)
        s = jnp.sum(e, axis=1, keepdims=True)
        r = pl.reciprocal(s, approx=True)   # EUP vrcp (off the VPU path)
        r = r * (2.0 - s * r)               # one Newton step -> f32 accuracy
        return (e * r).reshape(M, FP)

    # enc3 = [enc | enc | enc | 0]  (encoder weight columns tripled in wrapper)
    enc3 = mm(D, wenc_ref[...]) + b[0:1]                         # (M, FP)

    # fused softmax logits [fc_a | fc_o | fc_q](enc)  (block-diag pack)
    zs = mm(enc3, wsm_ref[...]) + b[1:2]                         # (M, FP)
    s_cat = softmax_seq(zs) * enc3                               # [s_ans|s_obj|s_que|0]

    # e-features: single K=2*FP matmul over [D | enc3]
    de = jnp.concatenate([D, enc3], axis=-1)                     # (M, 2FP)
    ze = mm(de, we_ref[...]) + b[2:3]                            # [e_ans|e_obj|e_que|0]

    # relu(w_s_*(s_*) + w_s_*_(e_*)) : single K=2*FP matmul over [s_cat | ze]
    sz = jnp.concatenate([s_cat, ze], axis=-1)
    h = jnp.maximum(mm(sz, ws_ref[...]) + b[3:4], 0.0)

    # w_g_* logits, softmax over seq
    za = mm(h, wg_ref[...]) + b[4:5]
    A = softmax_seq(za)                                          # [A_ans|A_obj|A_que|.]

    # gated + raw residual wide-linears: single K=2*FP matmul over [A*D | D]
    gd = jnp.concatenate([A * D, D], axis=-1)
    out = mm(gd, wr_ref[...]) + b[5:6]                           # [a_out|o_out|q_out|0]
    out_ref[...] = out.reshape(Bt, S, FP)


def _tensorcores_per_chip():
    try:
        kind = jax.devices()[0].device_kind.lower()
    except Exception:
        return 1
    # v7x has 2 TensorCores per chip; v5e/v6e have 1.
    return 2 if ("v7" in kind or "7x" in kind) else 1


def _pick_nb(B, S, FP, cores, vmem_budget=12 << 20):
    """Number of batch blocks: split across cores only when per-core work is
    large enough, and grow the split if a block would blow the VMEM budget."""
    def slab_bytes(nb):
        Bt = -(-B // nb)
        return 4 * Bt * S * FP * 4     # in + out slabs, double-buffered, f32

    nb = 1
    if cores > 1 and B % cores == 0 and (B // cores) * S >= 256:
        nb = cores
    while nb < B and (B % nb != 0 or slab_bytes(nb) > vmem_budget):
        nb += 1
    return nb


def graph_reasoning(answer, o_a, q_a, wsq, wwide, bias):
    bs, num, S, Fe = answer.shape
    B = bs * num
    F3 = 3 * Fe
    FP = max(128, ((F3 + 127) // 128) * 128)     # lane-padded slab width

    x = answer.reshape(B, S, Fe)
    o = o_a.reshape(B, S, Fe)
    q = q_a.reshape(B, S, Fe)
    D = jnp.concatenate(
        [x, o, q, jnp.zeros((B, S, FP - F3), jnp.float32)], axis=-1)   # (B,S,FP)

    zFF = jnp.zeros((Fe, Fe), jnp.float32)

    def bd3(a, b_, c):
        # block-diagonal (ans, obj, que) embedded in a zero (FP, FP) matrix
        W = jnp.zeros((FP, FP), jnp.float32)
        W = W.at[0 * Fe:1 * Fe, 0 * Fe:1 * Fe].set(a)
        W = W.at[1 * Fe:2 * Fe, 1 * Fe:2 * Fe].set(b_)
        W = W.at[2 * Fe:3 * Fe, 2 * Fe:3 * Fe].set(c)
        return W

    def padb(ra, rb, rc):
        r = jnp.concatenate([ra, rb, rc], axis=1)        # (1, 3Fe)
        return jnp.pad(r, ((0, 0), (0, FP - F3)))        # (1, FP)

    # encoder, with columns tripled so the kernel gets enc3 directly
    We = wsq[I_ENC]
    W_enc3 = jnp.zeros((FP, FP), jnp.float32)
    W_enc3 = (W_enc3.at[:Fe, 0:Fe].set(We)
                     .at[:Fe, Fe:2 * Fe].set(We)
                     .at[:Fe, 2 * Fe:3 * Fe].set(We))
    b_enc3 = padb(bias[I_ENC], bias[I_ENC], bias[I_ENC])

    # softmax logits [fc_a | fc_o | fc_q] on enc
    W_sm = bd3(wsq[I_FCA], wsq[I_FCO], wsq[I_FCQ])
    b_sm = padb(bias[I_FCA], bias[I_FCO], bias[I_FCQ])

    # e-features: stacked weight for LHS = [D | enc3]
    W_e_D = bd3(zFF, wwide[J_FCO_][Fe:], wwide[J_FCQ_][Fe:])
    W_e_enc = bd3(wsq[I_FCA_], wwide[J_FCO_][:Fe], wwide[J_FCQ_][:Fe])
    W_e = jnp.concatenate([W_e_D, W_e_enc], axis=0)                    # (2FP, FP)
    b_e = padb(bias[I_FCA_], bias[N_SQ + J_FCO_], bias[N_SQ + J_FCQ_])

    # w_s_* / w_s_*_ stacked for LHS = [s_cat | ze]
    Ws1 = bd3(wsq[I_WSA], wsq[I_WSO], wsq[I_WSQ])
    Ws2 = bd3(wsq[I_WSA_], wsq[I_WSO_], wsq[I_WSQ_])
    W_s = jnp.concatenate([Ws1, Ws2], axis=0)                          # (2FP, FP)
    b_ws = padb(bias[I_WSA] + bias[I_WSA_],
                bias[I_WSO] + bias[I_WSO_],
                bias[I_WSQ] + bias[I_WSQ_])

    # w_g_*
    Wg = bd3(wsq[I_WGA], wsq[I_WGO], wsq[I_WGQ])
    b_wg = padb(bias[I_WGA], bias[I_WGO], bias[I_WGQ])

    # residual wide-linears stacked for LHS = [A*D | D]
    Wr1 = bd3(wwide[J_RESA][:Fe], wwide[J_RESO][:Fe], wwide[J_RESQ][:Fe])
    Wr2 = bd3(wwide[J_RESA][Fe:], wwide[J_RESO][Fe:], wwide[J_RESQ][Fe:])
    W_r = jnp.concatenate([Wr1, Wr2], axis=0)                          # (2FP, FP)
    b_r = padb(bias[N_SQ + J_RESA], bias[N_SQ + J_RESO], bias[N_SQ + J_RESQ])

    b_pack = jnp.concatenate([b_enc3, b_sm, b_e, b_ws, b_wg, b_r], axis=0)  # (6, FP)

    # ---- grid: core-count / work / VMEM aware batch tiling ----
    cores = _tensorcores_per_chip()
    nb = _pick_nb(B, S, FP, cores)
    Bt = B // nb

    weights = (W_enc3, W_sm, W_e, W_s, Wg, W_r, b_pack)

    data_spec = pl.BlockSpec((Bt, S, FP), lambda b: (b, 0, 0))

    def full_spec(arr):
        n = arr.ndim
        return pl.BlockSpec(arr.shape, lambda b, _n=n: (0,) * _n)

    weight_bytes = sum(int(np.prod(w.shape)) * 4 for w in weights)
    slab_bytes = Bt * S * FP * 4
    need = 2 * weight_bytes + 4 * slab_bytes + (2 << 20)
    vmem_limit = int(min(need, 64 << 20)) if need > (16 << 20) else None

    out = pl.pallas_call(
        _graph_reasoning_kernel,
        out_shape=jax.ShapeDtypeStruct((B, S, FP), jnp.float32),
        grid_spec=pltpu.PrefetchScalarGridSpec(
            num_scalar_prefetch=0,
            grid=(nb,),
            in_specs=[data_spec] + [full_spec(w) for w in weights],
            out_specs=data_spec,
        ),
        compiler_params=pltpu.CompilerParams(
            dimension_semantics=("parallel",) if nb > 1 else ("arbitrary",),
            vmem_limit_bytes=vmem_limit,
        ),
    )(D, *weights)

    a_out = out[..., 0:Fe].reshape(bs, num, S, Fe)
    o_out = out[..., Fe:2 * Fe].reshape(bs, num, S, Fe)
    q_out = out[..., 2 * Fe:3 * Fe].reshape(bs, num, S, Fe)
    return a_out, o_out, q_out


# ---- pure-JAX reference (unfused, for correctness check) ----------------------
def graph_reasoning_ref(answer, o_a, q_a, wsq, wwide, bias):
    bs, num, S, Fe = answer.shape
    B = bs * num
    x = answer.reshape(B, S, Fe)
    o = o_a.reshape(B, S, Fe)
    q = q_a.reshape(B, S, Fe)

    def lin(v, i):
        return v @ wsq[i] + bias[i, 0]

    def lin2(v1, v2, j):
        return v1 @ wwide[j, :Fe] + v2 @ wwide[j, Fe:] + bias[N_SQ + j, 0]

    sm = lambda z: jax.nn.softmax(z, axis=-2)

    enc = lin(x, I_ENC)
    s_obj = sm(lin(enc, I_FCO)) * enc
    s_ans = sm(lin(enc, I_FCA)) * enc
    s_que = sm(lin(enc, I_FCQ)) * enc
    e_obj = lin2(enc, o, J_FCO_)
    e_ans = lin(enc, I_FCA_)
    e_que = lin2(enc, q, J_FCQ_)
    A_obj = sm(lin(jax.nn.relu(lin(s_obj, I_WSO) + lin(e_obj, I_WSO_)), I_WGO))
    A_ans = sm(lin(jax.nn.relu(lin(s_ans, I_WSA) + lin(e_ans, I_WSA_)), I_WGA))
    A_que = sm(lin(jax.nn.relu(lin(s_que, I_WSQ) + lin(e_que, I_WSQ_)), I_WGQ))
    a_out = lin2(A_ans * x, x, J_RESA)
    o_out = lin2(A_obj * o, o, J_RESO)
    q_out = lin2(A_que * q, q, J_RESQ)
    return (a_out.reshape(bs, num, S, Fe),
            o_out.reshape(bs, num, S, Fe),
            q_out.reshape(bs, num, S, Fe))


if __name__ == "__main__":
    bs, num, S, Fe = 2, 4, 8, 32   # in_fea = hidden = 32

    key = jax.random.PRNGKey(0)
    k1, k2, k3, k4, k5, k6 = jax.random.split(key, 6)

    answer = jax.random.normal(k1, (bs, num, S, Fe), dtype=jnp.float32)
    o_a = jax.random.normal(k2, (bs, num, S, Fe), dtype=jnp.float32)
    q_a = jax.random.normal(k3, (bs, num, S, Fe), dtype=jnp.float32)

    # Deterministic synthetic parameters (shapes dictated by the module __init__).
    # Weights stored pre-transposed: (in, out).
    wsq = 0.1 * jax.random.normal(k4, (N_SQ, Fe, Fe), dtype=jnp.float32)
    wwide = 0.1 * jax.random.normal(k5, (N_WIDE, 2 * Fe, Fe), dtype=jnp.float32)
    bias = 0.1 * jax.random.normal(k6, (N_SQ + N_WIDE, 1, Fe), dtype=jnp.float32)

    outs = graph_reasoning(answer, o_a, q_a, wsq, wwide, bias)
    outs = jax.block_until_ready(outs)

    refs = graph_reasoning_ref(answer, o_a, q_a, wsq, wwide, bias)
    for got, ref in zip(outs, refs):
        np.testing.assert_allclose(np.asarray(got), np.asarray(ref), atol=2e-5, rtol=2e-5)

    print("KERNEL_OK")
</pallas_src>

<mosaic_0001>
module attributes {stable_mosaic.version = 11 : i64} {
  func.func @_graph_reasoning_kernel(%arg0: i32, %arg1: memref<8x8x128xf32, #tpu.memory_space<vmem>>, %arg2: memref<128x128xf32, #tpu.memory_space<vmem>>, %arg3: memref<128x128xf32, #tpu.memory_space<vmem>>, %arg4: memref<256x128xf32, #tpu.memory_space<vmem>>, %arg5: memref<256x128xf32, #tpu.memory_space<vmem>>, %arg6: memref<128x128xf32, #tpu.memory_space<vmem>>, %arg7: memref<256x128xf32, #tpu.memory_space<vmem>>, %arg8: memref<6x128xf32, #tpu.memory_space<vmem>>, %arg9: memref<8x8x128xf32, #tpu.memory_space<vmem>>) attributes {dimension_semantics = [#tpu.dimension_semantics<arbitrary>], iteration_bounds = array<i64: 1>, scalar_prefetch = 0 : i64, scratch_operands = 0 : i64, tpu.core_type = #tpu.core_type<tc>, window_params = [{transform_indices = @transform_0, window_bounds = array<i64: 8, 8, 128>}, {pipeline_mode = #tpu.pipeline_mode<synchronous>, transform_indices = @transform_1, window_bounds = array<i64: 128, 128>}, {pipeline_mode = #tpu.pipeline_mode<synchronous>, transform_indices = @transform_2, window_bounds = array<i64: 128, 128>}, {pipeline_mode = #tpu.pipeline_mode<synchronous>, transform_indices = @transform_3, window_bounds = array<i64: 256, 128>}, {pipeline_mode = #tpu.pipeline_mode<synchronous>, transform_indices = @transform_4, window_bounds = array<i64: 256, 128>}, {pipeline_mode = #tpu.pipeline_mode<synchronous>, transform_indices = @transform_5, window_bounds = array<i64: 128, 128>}, {pipeline_mode = #tpu.pipeline_mode<synchronous>, transform_indices = @transform_6, window_bounds = array<i64: 256, 128>}, {pipeline_mode = #tpu.pipeline_mode<synchronous>, transform_indices = @transform_7, window_bounds = array<i64: 6, 128>}, {transform_indices = @transform_8, window_bounds = array<i64: 8, 8, 128>}]} {
    %c0 = arith.constant 0 : index
    %c0_0 = arith.constant 0 : index
    %c0_1 = arith.constant 0 : index
    %0 = vector.load %arg1[%c0, %c0_0, %c0_1] : memref<8x8x128xf32, #tpu.memory_space<vmem>>, vector<8x8x128xf32>
    %1 = vector.shape_cast %0 : vector<8x8x128xf32> to vector<64x128xf32>
    %c0_2 = arith.constant 0 : index
    %c0_3 = arith.constant 0 : index
    %2 = vector.load %arg8[%c0_2, %c0_3] : memref<6x128xf32, #tpu.memory_space<vmem>>, vector<6x128xf32>
    %c0_4 = arith.constant 0 : index
    %c0_5 = arith.constant 0 : index
    %3 = vector.load %arg2[%c0_4, %c0_5] : memref<128x128xf32, #tpu.memory_space<vmem>>, vector<128x128xf32>
    %cst = arith.constant dense<0.000000e+00> : vector<64x128xf32>
    %4 = tpu.matmul %1, %3, %cst {dimension_numbers = #tpu.dot_dimension_numbers<[1], [0], [0], [1], [0, 0, 1, 1], [], []>} : vector<64x128xf32>, vector<128x128xf32>, vector<64x128xf32> -> vector<64x128xf32>
    %5 = vector.extract_strided_slice %2 {offsets = [0, 0], sizes = [1, 128], strides = [1, 1]} : vector<6x128xf32> to vector<1x128xf32>
    %6 = vector.broadcast %5 : vector<1x128xf32> to vector<64x128xf32>
    %7 = arith.addf %4, %6 : vector<64x128xf32>
    %c0_6 = arith.constant 0 : index
    %c0_7 = arith.constant 0 : index
    %8 = vector.load %arg3[%c0_6, %c0_7] : memref<128x128xf32, #tpu.memory_space<vmem>>, vector<128x128xf32>
    %cst_8 = arith.constant dense<0.000000e+00> : vector<64x128xf32>
    %9 = tpu.matmul %7, %8, %cst_8 {dimension_numbers = #tpu.dot_dimension_numbers<[1], [0], [0], [1], [0, 0, 1, 1], [], []>} : vector<64x128xf32>, vector<128x128xf32>, vector<64x128xf32> -> vector<64x128xf32>
    %10 = vector.extract_strided_slice %2 {offsets = [1, 0], sizes = [1, 128], strides = [1, 1]} : vector<6x128xf32> to vector<1x128xf32>
    %11 = vector.broadcast %10 : vector<1x128xf32> to vector<64x128xf32>
    %12 = arith.addf %9, %11 : vector<64x128xf32>
    %13 = vector.shape_cast %12 : vector<64x128xf32> to vector<8x8x128xf32>
    %cst_9 = arith.constant dense<0xFF800000> : vector<8x128xf32>
    %14 = vector.multi_reduction <maximumf>, %13, %cst_9 [1] : vector<8x8x128xf32> to vector<8x128xf32>
    %15 = vector.shape_cast %14 : vector<8x128xf32> to vector<8x1x128xf32>
    %16 = vector.broadcast %15 : vector<8x1x128xf32> to vector<8x8x128xf32>
    %17 = arith.subf %13, %16 : vector<8x8x128xf32>
    %18 = math.exp %17 : vector<8x8x128xf32>
    %cst_10 = arith.constant dense<0.000000e+00> : vector<8x128xf32>
    %19 = vector.multi_reduction <add>, %18, %cst_10 [1] : vector<8x8x128xf32> to vector<8x128xf32>
    %20 = vector.shape_cast %19 : vector<8x128xf32> to vector<8x1x128xf32>
    %21 = tpu.reciprocal %20 {approx = true} : vector<8x1x128xf32> -> vector<8x1x128xf32>
    %22 = arith.mulf %20, %21 : vector<8x1x128xf32>
    %cst_11 = arith.constant 2.000000e+00 : f32
    %23 = vector.broadcast %cst_11 : f32 to vector<8x1x128xf32>
    %24 = arith.subf %23, %22 : vector<8x1x128xf32>
    %25 = arith.mulf %21, %24 : vector<8x1x128xf32>
    %26 = vector.broadcast %25 : vector<8x1x128xf32> to vector<8x8x128xf32>
    %27 = arith.mulf %18, %26 : vector<8x8x128xf32>
    %28 = vector.shape_cast %27 : vector<8x8x128xf32> to vector<64x128xf32>
    %29 = arith.mulf %28, %7 : vector<64x128xf32>
    %30 = tpu.concatenate %1, %7 in 1 : vector<64x128xf32>, vector<64x128xf32> -> vector<64x256xf32>
    %c0_12 = arith.constant 0 : index
    %c0_13 = arith.constant 0 : index
    %31 = vector.load %arg4[%c0_12, %c0_13] : memref<256x128xf32, #tpu.memory_space<vmem>>, vector<256x128xf32>
    %cst_14 = arith.constant dense<0.000000e+00> : vector<64x128xf32>
    %32 = tpu.matmul %30, %31, %cst_14 {dimension_numbers = #tpu.dot_dimension_numbers<[1], [0], [0], [1], [0, 0, 1, 1], [], []>} : vector<64x256xf32>, vector<256x128xf32>, vector<64x128xf32> -> vector<64x128xf32>
    %33 = vector.extract_strided_slice %2 {offsets = [2, 0], sizes = [1, 128], strides = [1, 1]} : vector<6x128xf32> to vector<1x128xf32>
    %34 = vector.broadcast %33 : vector<1x128xf32> to vector<64x128xf32>
    %35 = arith.addf %32, %34 : vector<64x128xf32>
    %36 = tpu.concatenate %29, %35 in 1 : vector<64x128xf32>, vector<64x128xf32> -> vector<64x256xf32>
    %c0_15 = arith.constant 0 : index
    %c0_16 = arith.constant 0 : index
    %37 = vector.load %arg5[%c0_15, %c0_16] : memref<256x128xf32, #tpu.memory_space<vmem>>, vector<256x128xf32>
    %cst_17 = arith.constant dense<0.000000e+00> : vector<64x128xf32>
    %38 = tpu.matmul %36, %37, %cst_17 {dimension_numbers = #tpu.dot_dimension_numbers<[1], [0], [0], [1], [0, 0, 1, 1], [], []>} : vector<64x256xf32>, vector<256x128xf32>, vector<64x128xf32> -> vector<64x128xf32>
    %39 = vector.extract_strided_slice %2 {offsets = [3, 0], sizes = [1, 128], strides = [1, 1]} : vector<6x128xf32> to vector<1x128xf32>
    %40 = vector.broadcast %39 : vector<1x128xf32> to vector<64x128xf32>
    %41 = arith.addf %38, %40 : vector<64x128xf32>
    %cst_18 = arith.constant 0.000000e+00 : f32
    %42 = vector.broadcast %cst_18 : f32 to vector<64x128xf32>
    %43 = arith.maximumf %41, %42 : vector<64x128xf32>
    %c0_19 = arith.constant 0 : index
    %c0_20 = arith.constant 0 : index
    %44 = vector.load %arg6[%c0_19, %c0_20] : memref<128x128xf32, #tpu.memory_space<vmem>>, vector<128x128xf32>
    %cst_21 = arith.constant dense<0.000000e+00> : vector<64x128xf32>
    %45 = tpu.matmul %43, %44, %cst_21 {dimension_numbers = #tpu.dot_dimension_numbers<[1], [0], [0], [1], [0, 0, 1, 1], [], []>} : vector<64x128xf32>, vector<128x128xf32>, vector<64x128xf32> -> vector<64x128xf32>
    %46 = vector.extract_strided_slice %2 {offsets = [4, 0], sizes = [1, 128], strides = [1, 1]} : vector<6x128xf32> to vector<1x128xf32>
    %47 = vector.broadcast %46 : vector<1x128xf32> to vector<64x128xf32>
    %48 = arith.addf %45, %47 : vector<64x128xf32>
    %49 = vector.shape_cast %48 : vector<64x128xf32> to vector<8x8x128xf32>
    %cst_22 = arith.constant dense<0xFF800000> : vector<8x128xf32>
    %50 = vector.multi_reduction <maximumf>, %49, %cst_22 [1] : vector<8x8x128xf32> to vector<8x128xf32>
    %51 = vector.shape_cast %50 : vector<8x128xf32> to vector<8x1x128xf32>
    %52 = vector.broadcast %51 : vector<8x1x128xf32> to vector<8x8x128xf32>
    %53 = arith.subf %49, %52 : vector<8x8x128xf32>
    %54 = math.exp %53 : vector<8x8x128xf32>
    %cst_23 = arith.constant dense<0.000000e+00> : vector<8x128xf32>
    %55 = vector.multi_reduction <add>, %54, %cst_23 [1] : vector<8x8x128xf32> to vector<8x128xf32>
    %56 = vector.shape_cast %55 : vector<8x128xf32> to vector<8x1x128xf32>
    %57 = tpu.reciprocal %56 {approx = true} : vector<8x1x128xf32> -> vector<8x1x128xf32>
    %58 = arith.mulf %56, %57 : vector<8x1x128xf32>
    %cst_24 = arith.constant 2.000000e+00 : f32
    %59 = vector.broadcast %cst_24 : f32 to vector<8x1x128xf32>
    %60 = arith.subf %59, %58 : vector<8x1x128xf32>
    %61 = arith.mulf %57, %60 : vector<8x1x128xf32>
    %62 = vector.broadcast %61 : vector<8x1x128xf32> to vector<8x8x128xf32>
    %63 = arith.mulf %54, %62 : vector<8x8x128xf32>
    %64 = vector.shape_cast %63 : vector<8x8x128xf32> to vector<64x128xf32>
    %65 = arith.mulf %64, %1 : vector<64x128xf32>
    %66 = tpu.concatenate %65, %1 in 1 : vector<64x128xf32>, vector<64x128xf32> -> vector<64x256xf32>
    %c0_25 = arith.constant 0 : index
    %c0_26 = arith.constant 0 : index
    %67 = vector.load %arg7[%c0_25, %c0_26] : memref<256x128xf32, #tpu.memory_space<vmem>>, vector<256x128xf32>
    %cst_27 = arith.constant dense<0.000000e+00> : vector<64x128xf32>
    %68 = tpu.matmul %66, %67, %cst_27 {dimension_numbers = #tpu.dot_dimension_numbers<[1], [0], [0], [1], [0, 0, 1, 1], [], []>} : vector<64x256xf32>, vector<256x128xf32>, vector<64x128xf32> -> vector<64x128xf32>
    %69 = vector.extract_strided_slice %2 {offsets = [5, 0], sizes = [1, 128], strides = [1, 1]} : vector<6x128xf32> to vector<1x128xf32>
    %70 = vector.broadcast %69 : vector<1x128xf32> to vector<64x128xf32>
    %71 = arith.addf %68, %70 : vector<64x128xf32>
    %72 = vector.shape_cast %71 : vector<64x128xf32> to vector<8x8x128xf32>
    %c0_28 = arith.constant 0 : index
    %c0_29 = arith.constant 0 : index
    %c0_30 = arith.constant 0 : index
    %73 = vector.load %arg9[%c0_28, %c0_29, %c0_30] : memref<8x8x128xf32, #tpu.memory_space<vmem>>, vector<8x8x128xf32>
    tpu.vector_store %arg9[%c0_28, %c0_29, %c0_30], %72 {strides = array<i32>} : memref<8x8x128xf32, #tpu.memory_space<vmem>>, vector<8x8x128xf32>,
    return
  }
  func.func @transform_0(%arg0: i32) -> (i32, i32, i32) {
    %c0_i32 = arith.constant 0 : i32
    %c0_i32_0 = arith.constant 0 : i32
    %c0_i32_1 = arith.constant 0 : i32
    return %arg0, %c0_i32, %c0_i32_0 : i32, i32, i32
  }
  func.func @transform_1(%arg0: i32) -> (i32, i32) {
    %c0_i32 = arith.constant 0 : i32
    %c0_i32_0 = arith.constant 0 : i32
    %c0_i32_1 = arith.constant 0 : i32
    return %c0_i32, %c0_i32_0 : i32, i32
  }
  func.func @transform_2(%arg0: i32) -> (i32, i32) {
    %c0_i32 = arith.constant 0 : i32
    %c0_i32_0 = arith.constant 0 : i32
    %c0_i32_1 = arith.constant 0 : i32
    return %c0_i32, %c0_i32_0 : i32, i32
  }
  func.func @transform_3(%arg0: i32) -> (i32, i32) {
    %c0_i32 = arith.constant 0 : i32
    %c0_i32_0 = arith.constant 0 : i32
    %c0_i32_1 = arith.constant 0 : i32
    return %c0_i32, %c0_i32_0 : i32, i32
  }
  func.func @transform_4(%arg0: i32) -> (i32, i32) {
    %c0_i32 = arith.constant 0 : i32
    %c0_i32_0 = arith.constant 0 : i32
    %c0_i32_1 = arith.constant 0 : i32
    return %c0_i32, %c0_i32_0 : i32, i32
  }
  func.func @transform_5(%arg0: i32) -> (i32, i32) {
    %c0_i32 = arith.constant 0 : i32
    %c0_i32_0 = arith.constant 0 : i32
    %c0_i32_1 = arith.constant 0 : i32
    return %c0_i32, %c0_i32_0 : i32, i32
  }
  func.func @transform_6(%arg0: i32) -> (i32, i32) {
    %c0_i32 = arith.constant 0 : i32
    %c0_i32_0 = arith.constant 0 : i32
    %c0_i32_1 = arith.constant 0 : i32
    return %c0_i32, %c0_i32_0 : i32, i32
  }
  func.func @transform_7(%arg0: i32) -> (i32, i32) {
    %c0_i32 = arith.constant 0 : i32
    %c0_i32_0 = arith.constant 0 : i32
    %c0_i32_1 = arith.constant 0 : i32
    return %c0_i32, %c0_i32_0 : i32, i32
  }
  func.func @transform_8(%arg0: i32) -> (i32, i32, i32) {
    %c0_i32 = arith.constant 0 : i32
    %c0_i32_0 = arith.constant 0 : i32
    %c0_i32_1 = arith.constant 0 : i32
    return %arg0, %c0_i32, %c0_i32_0 : i32, i32, i32
  }
}

</mosaic_0001>

<llo_original>
// kernel: tpu_custom_call.1
$region0: #{tpu_custom_call.1}
  #allocation0 [shape = 'u32[]', space=smem, size = 0x4, offset = 0x4, fixed_abs, tag = 'smem constant byte address 0x4 - core index']
  #allocation1 [shape = 'u32[144,128]{1,0:T(1,128)}', space=vmem, size = 0x12000, scoped, tag = 'internal scratch']
  %s0 = inlined_call_operand.hbm [shape: f32[8,8,128], index: 0, kind: input, shape index: {}]
  %s1 = inlined_call_operand.hbm [shape: f32[128,128], index: 1, kind: input, shape index: {}]
  %s2 = inlined_call_operand.hbm [shape: f32[128,128], index: 2, kind: input, shape index: {}]
  %s3 = inlined_call_operand.hbm [shape: f32[256,128], index: 3, kind: input, shape index: {}]
  %s4 = inlined_call_operand.hbm [shape: f32[256,128], index: 4, kind: input, shape index: {}]
  %s5 = inlined_call_operand.hbm [shape: f32[128,128], index: 5, kind: input, shape index: {}]
  %s6 = inlined_call_operand.hbm [shape: f32[256,128], index: 6, kind: input, shape index: {}]
  %s7 = inlined_call_operand.vmem [shape: f32[6,128], index: 7, kind: input, shape index: {}]
  %s8 = inlined_call_operand.hbm [shape: f32[8,8,128], index: 8, kind: output, shape index: {}]
  %s9 = sld [smem:[#allocation0]]
  $region70: #{tpu_custom_call.1} parent=0
    _
  %s11 = ssub.s32 1, %s9
  %s12 = scalar_select 0, %s11, %s9
  $region1: #{tpu_custom_call.1} parent=0
    #allocation2 [shape = 'u8[32768]{0}', space=vmem, size = 0x8000, scoped, tag = 'input window, operand 0, single buffered']
    #allocation3 [shape = 's32[1]{0}', space=sflag, size = 0x4, scoped, tag = 'scoped memory for tpu_custom_call.1']
    #allocation4 [shape = 's32[1]{0}', space=sflag, size = 0x4, scoped, tag = 'scoped memory for tpu_custom_call.1']
    #allocation5 [shape = 'u8[65536]{0}', space=vmem, size = 0x10000, scoped, tag = 'input window, operand 1, single buffered']
    #allocation6 [shape = 's32[1]{0}', space=sflag, size = 0x4, scoped, tag = 'scoped memory for tpu_custom_call.1']
    #allocation7 [shape = 'u8[65536]{0}', space=vmem, size = 0x10000, scoped, tag = 'input window, operand 2, single buffered']
    #allocation8 [shape = 'u8[131072]{0}', space=vmem, size = 0x20000, scoped, tag = 'input window, operand 3, single buffered']
    #allocation9 [shape = 's32[1]{0}', space=sflag, size = 0x4, scoped, tag = 'scoped memory for tpu_custom_call.1']
    #allocation10 [shape = 'u8[131072]{0}', space=vmem, size = 0x20000, scoped, tag = 'input window, operand 4, single buffered']
    #allocation11 [shape = 'u8[65536]{0}', space=vmem, size = 0x10000, scoped, tag = 'input window, operand 5, single buffered']
    #allocation12 [shape = 's32[1]{0}', space=sflag, size = 0x4, scoped, tag = 'scoped memory for tpu_custom_call.1']
    #allocation13 [shape = 'u8[131072]{0}', space=vmem, size = 0x20000, scoped, tag = 'input window, operand 6, single buffered']
    #allocation14 [shape = 'u8[32768]{0}', space=vmem, size = 0x8000, scoped, tag = 'output window, operand 0, single buffered']
    %13 = vsyncpa [#allocation3], 0
    %14 = vsyncpa [#allocation6], 0
    %15 = vsyncpa [#allocation9], 0
    %16 = vsyncpa [#allocation12], 0
    %17 = vsyncpa [#allocation4], 0
    // Predicated region
    $region2: #{tpu_custom_call.1} parent=1 // pred_check
      _
    $region3: #{tpu_custom_call.1} parent=1 // pred_check_branch
      %19 = sbr.rel (0) target = $region5
    $region4: #{tpu_custom_call.1} parent=1 // pred_region
      %s21 = ssub.s32 1024, 1024
      %22 = vsyncadd [#allocation3], %s21
      %s23 = sshll.u32 [#allocation2], 4
      %s24 = int_to_ptr.vmem [resolvable:$true] %s23
      %29 = dma.hbm_to_vmem [thread:$0]  %s0, 1024, %s24, [#allocation3], 128, 128, 8
    $region5: #{tpu_custom_call.1} parent=1 // pred_fallthru
      _
    // Predicated region
    $region6: #{tpu_custom_call.1} parent=1 // pred_check
      _
    $region7: #{tpu_custom_call.1} parent=1 // pred_check_branch
      %31 = sbr.rel (0) target = $region9
    $region8: #{tpu_custom_call.1} parent=1 // pred_region
      %s33 = ssub.s32 2048, 2048
      %34 = vsyncadd [#allocation6], %s33
      %s35 = sshll.u32 [#allocation5], 4
      %s36 = int_to_ptr.vmem [resolvable:$true] %s35
      %41 = dma.hbm_to_vmem [thread:$0]  %s1, 2048, %s36, [#allocation6], 128, 128, 8
    $region9: #{tpu_custom_call.1} parent=1 // pred_fallthru
      _
    // Predicated region
    $region10: #{tpu_custom_call.1} parent=1 // pred_check
      _
    $region11: #{tpu_custom_call.1} parent=1 // pred_check_branch
      %43 = sbr.rel (0) target = $region13
    $region12: #{tpu_custom_call.1} parent=1 // pred_region
      %s45 = ssub.s32 2048, 2048
      %46 = vsyncadd [#allocation6], %s45
      %s47 = sshll.u32 [#allocation7], 4
      %s48 = int_to_ptr.vmem [resolvable:$true] %s47
      %53 = dma.hbm_to_vmem [thread:$0]  %s2, 2048, %s48, [#allocation6], 128, 128, 8
    $region13: #{tpu_custom_call.1} parent=1 // pred_fallthru
      _
    // Predicated region
    $region14: #{tpu_custom_call.1} parent=1 // pred_check
      _
    $region15: #{tpu_custom_call.1} parent=1 // pred_check_branch
      %55 = sbr.rel (0) target = $region17
    $region16: #{tpu_custom_call.1} parent=1 // pred_region
      %s57 = ssub.s32 4096, 4096
      %58 = vsyncadd [#allocation9], %s57
      %s59 = sshll.u32 [#allocation8], 4
      %s60 = int_to_ptr.vmem [resolvable:$true] %s59
      %65 = dma.hbm_to_vmem [thread:$0]  %s3, 4096, %s60, [#allocation9], 128, 128, 8
    $region17: #{tpu_custom_call.1} parent=1 // pred_fallthru
      _
    // Predicated region
    $region18: #{tpu_custom_call.1} parent=1 // pred_check
      _
    $region19: #{tpu_custom_call.1} parent=1 // pred_check_branch
      %67 = sbr.rel (0) target = $region21
    $region20: #{tpu_custom_call.1} parent=1 // pred_region
      %s69 = ssub.s32 4096, 4096
      %70 = vsyncadd [#allocation9], %s69
      %s71 = sshll.u32 [#allocation10], 4
      %s72 = int_to_ptr.vmem [resolvable:$true] %s71
      %77 = dma.hbm_to_vmem [thread:$0]  %s4, 4096, %s72, [#allocation9], 128, 128, 8
    $region21: #{tpu_custom_call.1} parent=1 // pred_fallthru
      _
    // Predicated region
    $region22: #{tpu_custom_call.1} parent=1 // pred_check
      _
    $region23: #{tpu_custom_call.1} parent=1 // pred_check_branch
      %79 = sbr.rel (0) target = $region25
    $region24: #{tpu_custom_call.1} parent=1 // pred_region
      %s81 = ssub.s32 2048, 2048
      %82 = vsyncadd [#allocation12], %s81
      %s83 = sshll.u32 [#allocation11], 4
      %s84 = int_to_ptr.vmem [resolvable:$true] %s83
      %89 = dma.hbm_to_vmem [thread:$0]  %s5, 2048, %s84, [#allocation12], 128, 128, 8
    $region25: #{tpu_custom_call.1} parent=1 // pred_fallthru
      _
    // Predicated region
    $region26: #{tpu_custom_call.1} parent=1 // pred_check
      _
    $region27: #{tpu_custom_call.1} parent=1 // pred_check_branch
      %91 = sbr.rel (0) target = $region29
    $region28: #{tpu_custom_call.1} parent=1 // pred_region
      %s93 = ssub.s32 4096, 4096
      %94 = vsyncadd [#allocation12], %s93
      %s95 = sshll.u32 [#allocation13], 4
      %s96 = int_to_ptr.vmem [resolvable:$true] %s95
      %101 = dma.hbm_to_vmem [thread:$0]  %s6, 4096, %s96, [#allocation12], 128, 128, 8
    $region29: #{tpu_custom_call.1} parent=1 // pred_fallthru
      _
    // Predicated region
    $region30: #{tpu_custom_call.1} parent=1 // pred_check
      _
    $region31: #{tpu_custom_call.1} parent=1 // pred_check_branch
      %103 = sbr.rel (0) target = $region33
    $region32: #{tpu_custom_call.1} parent=1 // pred_region
      _
    $region33: #{tpu_custom_call.1} parent=1 // pred_fallthru
      _
    // Predicated region
    $region34: #{tpu_custom_call.1} parent=1 // pred_check
      _
    $region35: #{tpu_custom_call.1} parent=1 // pred_check_branch
      %105 = sbr.rel (0) target = $region37
    $region36: #{tpu_custom_call.1} parent=1 // pred_region
      %106 = dma.done [#allocation3], 1024
    $region37: #{tpu_custom_call.1} parent=1 // pred_fallthru
      _
    // Predicated region
    $region38: #{tpu_custom_call.1} parent=1 // pred_check
      _
    $region39: #{tpu_custom_call.1} parent=1 // pred_check_branch
      %108 = sbr.rel (0) target = $region41
    $region40: #{tpu_custom_call.1} parent=1 // pred_region
      %109 = dma.done [#allocation6], 2048
    $region41: #{tpu_custom_call.1} parent=1 // pred_fallthru
      _
    // Predicated region
    $region42: #{tpu_custom_call.1} parent=1 // pred_check
      _
    $region43: #{tpu_custom_call.1} parent=1 // pred_check_branch
      %111 = sbr.rel (0) target = $region45
    $region44: #{tpu_custom_call.1} parent=1 // pred_region
      %112 = dma.done [#allocation6], 2048
    $region45: #{tpu_custom_call.1} parent=1 // pred_fallthru
      _
    // Predicated region
    $region46: #{tpu_custom_call.1} parent=1 // pred_check
      _
    $region47: #{tpu_custom_call.1} parent=1 // pred_check_branch
      %114 = sbr.rel (0) target = $region49
    $region48: #{tpu_custom_call.1} parent=1 // pred_region
      %115 = dma.done [#allocation9], 4096
    $region49: #{tpu_custom_call.1} parent=1 // pred_fallthru
      _
    // Predicated region
    $region50: #{tpu_custom_call.1} parent=1 // pred_check
      _
    $region51: #{tpu_custom_call.1} parent=1 // pred_check_branch
      %117 = sbr.rel (0) target = $region53
    $region52: #{tpu_custom_call.1} parent=1 // pred_region
      %118 = dma.done [#allocation9], 4096
    $region53: #{tpu_custom_call.1} parent=1 // pred_fallthru
      _
    // Predicated region
    $region54: #{tpu_custom_call.1} parent=1 // pred_check
      _
    $region55: #{tpu_custom_call.1} parent=1 // pred_check_branch
      %120 = sbr.rel (0) target = $region57
    $region56: #{tpu_custom_call.1} parent=1 // pred_region
      %121 = dma.done [#allocation12], 2048
    $region57: #{tpu_custom_call.1} parent=1 // pred_fallthru
      _
    // Predicated region
    $region58: #{tpu_custom_call.1} parent=1 // pred_check
      _
    $region59: #{tpu_custom_call.1} parent=1 // pred_check_branch
      %123 = sbr.rel (0) target = $region61
    $region60: #{tpu_custom_call.1} parent=1 // pred_region
      %124 = dma.done [#allocation12], 4096
    $region61: #{tpu_custom_call.1} parent=1 // pred_fallthru
      _
    %v125 = vld [vmem:[#allocation2] sm:$0xff]
    %v126 = vld [vmem:[#allocation2 + $0x8] sm:$0xff]
    %v127 = vld [vmem:[#allocation2 + $0x10] sm:$0xff]
    %v128 = vld [vmem:[#allocation2 + $0x18] sm:$0xff]
    %v129 = vld [vmem:[#allocation2 + $0x20] sm:$0xff]
    %v130 = vld [vmem:[#allocation2 + $0x28] sm:$0xff]
    %v131 = vld [vmem:[#allocation2 + $0x30] sm:$0xff]
    %v132 = vld [vmem:[#allocation2 + $0x38] sm:$0xff]
    %v133 = vld [vmem:[%s7] sm:$0x3f]
    %v134 = vld [vmem:[#allocation5] sm:$0xff]
    %v135 = vld [vmem:[#allocation5 + $0x8] sm:$0xff]
    %v136 = vld [vmem:[#allocation5 + $0x10] sm:$0xff]
    %v137 = vld [vmem:[#allocation5 + $0x18] sm:$0xff]
    %v138 = vld [vmem:[#allocation5 + $0x20] sm:$0xff]
    %v139 = vld [vmem:[#allocation5 + $0x28] sm:$0xff]
    %v140 = vld [vmem:[#allocation5 + $0x30] sm:$0xff]
    %v141 = vld [vmem:[#allocation5 + $0x38] sm:$0xff]
    %v142 = vld [vmem:[#allocation5 + $0x40] sm:$0xff]
    %v143 = vld [vmem:[#allocation5 + $0x48] sm:$0xff]
    %v144 = vld [vmem:[#allocation5 + $0x50] sm:$0xff]
    %v145 = vld [vmem:[#allocation5 + $0x58] sm:$0xff]
    %v146 = vld [vmem:[#allocation5 + $0x60] sm:$0xff]
    %v147 = vld [vmem:[#allocation5 + $0x68] sm:$0xff]
    %v148 = vld [vmem:[#allocation5 + $0x70] sm:$0xff]
    %v149 = vld [vmem:[#allocation5 + $0x78] sm:$0xff]
    %v150 = vlaneseq
    %v151 = vshrl.u32 %v150, 7
    %v152 = vsub.s32 0, %v151
    %v153 = vrot.slane %v133, %v152
    %154 = vmatprep.subr.mxu0 0.0
    %155 = vmatpush1.msra.mxu0 %v134
    %156 = vmatprep.subr.mxu0 0.0
    %157 = vmatpush1.msra.mxu0 %v135
    %158 = vmatprep.subr.mxu0 0.0
    %159 = vmatpush1.msra.mxu0 %v136
    %160 = vmatprep.subr.mxu0 0.0
    %161 = vmatpush1.msra.mxu0 %v137
    %162 = vmatprep.subr.mxu0 0.0
    %163 = vmatpush1.msra.mxu0 %v138
    %164 = vmatprep.subr.mxu0 0.0
    %165 = vmatpush1.msra.mxu0 %v139
    %166 = vmatprep.subr.mxu0 0.0
    %167 = vmatpush1.msra.mxu0 %v140
    %168 = vmatprep.subr.mxu0 0.0
    %169 = vmatpush1.msra.mxu0 %v141
    %170 = vmatprep.subr.mxu0 0.0
    %171 = vmatpush1.msra.mxu0 %v142
    %172 = vmatprep.subr.mxu0 0.0
    %173 = vmatpush1.msra.mxu0 %v143
    %174 = vmatprep.subr.mxu0 0.0
    %175 = vmatpush1.msra.mxu0 %v144
    %176 = vmatprep.subr.mxu0 0.0
    %177 = vmatpush1.msra.mxu0 %v145
    %178 = vmatprep.subr.mxu0 0.0
    %179 = vmatpush1.msra.mxu0 %v146
    %180 = vmatprep.subr.mxu0 0.0
    %181 = vmatpush1.msra.mxu0 %v147
    %182 = vmatprep.subr.mxu0 0.0
    %183 = vmatpush1.msra.mxu0 %v148
    %184 = vmatprep.subr.mxu0 0.0
    %185 = vmatpush1.msra.mxu0 %v149
    %186 = vmatprep.subr.mxu0 0.0
    %187 = vmatpush1.msra.mxu0 0.0
    %188 = vmatprep.subr.mxu0 0.0
    %189 = vmatpush1.msra.mxu0 0.0
    %190 = vmatprep.subr.mxu0 0.0
    %191 = vmatpush1.msra.mxu0 0.0
    %192 = vmatprep.subr.mxu0 0.0
    %193 = vmatpush1.msra.mxu0 0.0
    %194 = vmatprep.subr.mxu0 0.0
    %195 = vmatpush1.msra.mxu0 0.0
    %196 = vmatprep.subr.mxu0 0.0
    %197 = vmatpush1.msra.mxu0 0.0
    %198 = vmatprep.subr.mxu0 0.0
    %199 = vmatpush1.msra.mxu0 0.0
    %200 = vmatprep.subr.mxu0 0.0
    %201 = vmatpush1.msra.mxu0 0.0
    %202 = vmatprep.subr.mxu0 0.0
    %203 = vmatpush1.msra.mxu0 0.0
    %204 = vmatprep.subr.mxu0 0.0
    %205 = vmatpush1.msra.mxu0 0.0
    %206 = vmatprep.subr.mxu0 0.0
    %207 = vmatpush1.msra.mxu0 0.0
    %208 = vmatprep.subr.mxu0 0.0
    %209 = vmatpush1.msra.mxu0 0.0
    %210 = vmatprep.subr.mxu0 0.0
    %211 = vmatpush1.msra.mxu0 0.0
    %212 = vmatprep.subr.mxu0 0.0
    %213 = vmatpush1.msra.mxu0 0.0
    %214 = vmatprep.subr.mxu0 0.0
    %215 = vmatpush1.msra.mxu0 0.0
    %216 = vmatprep.subr.mxu0 0.0
    %217 = vmatpush1.msra.mxu0 0.0
    %218 = vmatprep.mubr.f32.mxu0 0.0
    %219 = vmatmul.mubr.f32.gmra.mrb[0].mxu0 %v125
    %v220 = vpop.f32.mrb[0].mxu0
    %v221 = vadd.f32 %v153, %v220
    %v222 = vpop.f32.mrb[0].mxu0
    %223 = vmatprep.mubr.f32.mxu0 0.0
    %224 = vmatmul.mubr.f32.gmra.mrb[0].mxu0 %v126
    %v225 = vpop.f32.mrb[0].mxu0
    %v226 = vadd.f32 %v153, %v225
    %v227 = vpop.f32.mrb[0].mxu0
    %228 = vmatprep.mubr.f32.mxu0 0.0
    %229 = vmatmul.mubr.f32.gmra.mrb[0].mxu0 %v127
    %v230 = vpop.f32.mrb[0].mxu0
    %v231 = vadd.f32 %v153, %v230
    %v232 = vpop.f32.mrb[0].mxu0
    %233 = vmatprep.mubr.f32.mxu0 0.0
    %234 = vmatmul.mubr.f32.gmra.mrb[0].mxu0 %v128
    %v235 = vpop.f32.mrb[0].mxu0
    %v236 = vadd.f32 %v153, %v235
    %v237 = vpop.f32.mrb[0].mxu0
    %238 = vmatprep.mubr.f32.mxu0 0.0
    %239 = vmatmul.mubr.f32.gmra.mrb[0].mxu0 %v129
    %v240 = vpop.f32.mrb[0].mxu0
    %v241 = vadd.f32 %v153, %v240
    %v242 = vpop.f32.mrb[0].mxu0
    %243 = vmatprep.mubr.f32.mxu0 0.0
    %244 = vmatmul.mubr.f32.gmra.mrb[0].mxu0 %v130
    %v245 = vpop.f32.mrb[0].mxu0
    %v246 = vadd.f32 %v153, %v245
    %v247 = vpop.f32.mrb[0].mxu0
    %248 = vmatprep.mubr.f32.mxu0 0.0
    %249 = vmatmul.mubr.f32.gmra.mrb[0].mxu0 %v131
    %v250 = vpop.f32.mrb[0].mxu0
    %v251 = vadd.f32 %v153, %v250
    %v252 = vpop.f32.mrb[0].mxu0
    %253 = vmatprep.mubr.f32.mxu0 0.0
    %254 = vmatmul.mubr.f32.gmra.mrb[0].mxu0 %v132
    %v255 = vpop.f32.mrb[0].mxu0
    %v256 = vadd.f32 %v153, %v255
    %v257 = vpop.f32.mrb[0].mxu0
    %258 = vdwg.mxu0
    %v259 = vld [vmem:[#allocation7] sm:$0xff]
    %v260 = vld [vmem:[#allocation7 + $0x8] sm:$0xff]
    %v261 = vld [vmem:[#allocation7 + $0x10] sm:$0xff]
    %v262 = vld [vmem:[#allocation7 + $0x18] sm:$0xff]
    %v263 = vld [vmem:[#allocation7 + $0x20] sm:$0xff]
    %v264 = vld [vmem:[#allocation7 + $0x28] sm:$0xff]
    %v265 = vld [vmem:[#allocation7 + $0x30] sm:$0xff]
    %v266 = vld [vmem:[#allocation7 + $0x38] sm:$0xff]
    %v267 = vld [vmem:[#allocation7 + $0x40] sm:$0xff]
    %v268 = vld [vmem:[#allocation7 + $0x48] sm:$0xff]
    %v269 = vld [vmem:[#allocation7 + $0x50] sm:$0xff]
    %v270 = vld [vmem:[#allocation7 + $0x58] sm:$0xff]
    %v271 = vld [vmem:[#allocation7 + $0x60] sm:$0xff]
    %v272 = vld [vmem:[#allocation7 + $0x68] sm:$0xff]
    %v273 = vld [vmem:[#allocation7 + $0x70] sm:$0xff]
    %v274 = vld [vmem:[#allocation7 + $0x78] sm:$0xff]
    %v275 = vlaneseq
    %v276 = vshrl.u32 %v275, 7
    %v277 = vsub.s32 1, %v276
    %v278 = vrot.slane %v133, %v277
    %279 = vmatprep.subr.mxu0 0.0
    %280 = vmatpush1.msra.mxu0 %v259
    %281 = vmatprep.subr.mxu0 0.0
    %282 = vmatpush1.msra.mxu0 %v260
    %283 = vmatprep.subr.mxu0 0.0
    %284 = vmatpush1.msra.mxu0 %v261
    %285 = vmatprep.subr.mxu0 0.0
    %286 = vmatpush1.msra.mxu0 %v262
    %287 = vmatprep.subr.mxu0 0.0
    %288 = vmatpush1.msra.mxu0 %v263
    %289 = vmatprep.subr.mxu0 0.0
    %290 = vmatpush1.msra.mxu0 %v264
    %291 = vmatprep.subr.mxu0 0.0
    %292 = vmatpush1.msra.mxu0 %v265
    %293 = vmatprep.subr.mxu0 0.0
    %294 = vmatpush1.msra.mxu0 %v266
    %295 = vmatprep.subr.mxu0 0.0
    %296 = vmatpush1.msra.mxu0 %v267
    %297 = vmatprep.subr.mxu0 0.0
    %298 = vmatpush1.msra.mxu0 %v268
    %299 = vmatprep.subr.mxu0 0.0
    %300 = vmatpush1.msra.mxu0 %v269
    %301 = vmatprep.subr.mxu0 0.0
    %302 = vmatpush1.msra.mxu0 %v270
    %303 = vmatprep.subr.mxu0 0.0
    %304 = vmatpush1.msra.mxu0 %v271
    %305 = vmatprep.subr.mxu0 0.0
    %306 = vmatpush1.msra.mxu0 %v272
    %307 = vmatprep.subr.mxu0 0.0
    %308 = vmatpush1.msra.mxu0 %v273
    %309 = vmatprep.subr.mxu0 0.0
    %310 = vmatpush1.msra.mxu0 %v274
    %311 = vmatprep.subr.mxu0 0.0
    %312 = vmatpush1.msra.mxu0 0.0
    %313 = vmatprep.subr.mxu0 0.0
    %314 = vmatpush1.msra.mxu0 0.0
    %315 = vmatprep.subr.mxu0 0.0
    %316 = vmatpush1.msra.mxu0 0.0
    %317 = vmatprep.subr.mxu0 0.0
    %318 = vmatpush1.msra.mxu0 0.0
    %319 = vmatprep.subr.mxu0 0.0
    %320 = vmatpush1.msra.mxu0 0.0
    %321 = vmatprep.subr.mxu0 0.0
    %322 = vmatpush1.msra.mxu0 0.0
    %323 = vmatprep.subr.mxu0 0.0
    %324 = vmatpush1.msra.mxu0 0.0
    %325 = vmatprep.subr.mxu0 0.0
    %326 = vmatpush1.msra.mxu0 0.0
    %327 = vmatprep.subr.mxu0 0.0
    %328 = vmatpush1.msra.mxu0 0.0
    %329 = vmatprep.subr.mxu0 0.0
    %330 = vmatpush1.msra.mxu0 0.0
    %331 = vmatprep.subr.mxu0 0.0
    %332 = vmatpush1.msra.mxu0 0.0
    %333 = vmatprep.subr.mxu0 0.0
    %334 = vmatpush1.msra.mxu0 0.0
    %335 = vmatprep.subr.mxu0 0.0
    %336 = vmatpush1.msra.mxu0 0.0
    %337 = vmatprep.subr.mxu0 0.0
    %338 = vmatpush1.msra.mxu0 0.0
    %339 = vmatprep.subr.mxu0 0.0
    %340 = vmatpush1.msra.mxu0 0.0
    %341 = vmatprep.subr.mxu0 0.0
    %342 = vmatpush1.msra.mxu0 0.0
    %343 = vmatprep.mubr.f32.mxu0 0.0
    %344 = vmatmul.mubr.f32.gmra.mrb[0].mxu0 %v221
    %v345 = vpop.f32.mrb[0].mxu0
    %v346 = vadd.f32 %v278, %v345
    %v347 = vpop.f32.mrb[0].mxu0
    %348 = vmatprep.mubr.f32.mxu0 0.0
    %349 = vmatmul.mubr.f32.gmra.mrb[0].mxu0 %v226
    %v350 = vpop.f32.mrb[0].mxu0
    %v351 = vadd.f32 %v278, %v350
    %v352 = vpop.f32.mrb[0].mxu0
    %353 = vmatprep.mubr.f32.mxu0 0.0
    %354 = vmatmul.mubr.f32.gmra.mrb[0].mxu0 %v231
    %v355 = vpop.f32.mrb[0].mxu0
    %v356 = vadd.f32 %v278, %v355
    %v357 = vpop.f32.mrb[0].mxu0
    %358 = vmatprep.mubr.f32.mxu0 0.0
    %359 = vmatmul.mubr.f32.gmra.mrb[0].mxu0 %v236
    %v360 = vpop.f32.mrb[0].mxu0
    %v361 = vadd.f32 %v278, %v360
    %v362 = vpop.f32.mrb[0].mxu0
    %363 = vmatprep.mubr.f32.mxu0 0.0
    %364 = vmatmul.mubr.f32.gmra.mrb[0].mxu0 %v241
    %v365 = vpop.f32.mrb[0].mxu0
    %v366 = vadd.f32 %v278, %v365
    %v367 = vpop.f32.mrb[0].mxu0
    %368 = vmatprep.mubr.f32.mxu0 0.0
    %369 = vmatmul.mubr.f32.gmra.mrb[0].mxu0 %v246
    %v370 = vpop.f32.mrb[0].mxu0
    %v371 = vadd.f32 %v278, %v370
    %v372 = vpop.f32.mrb[0].mxu0
    %373 = vmatprep.mubr.f32.mxu0 0.0
    %374 = vmatmul.mubr.f32.gmra.mrb[0].mxu0 %v251
    %v375 = vpop.f32.mrb[0].mxu0
    %v376 = vadd.f32 %v278, %v375
    %v377 = vpop.f32.mrb[0].mxu0
    %378 = vmatprep.mubr.f32.mxu0 0.0
    %379 = vmatmul.mubr.f32.gmra.mrb[0].mxu0 %v256
    %v380 = vpop.f32.mrb[0].mxu0
    %v381 = vadd.f32 %v278, %v380
    %v382 = vpop.f32.mrb[0].mxu0
    %383 = vdwg.mxu0
    %v384 = vrot.slane %v346, 4
    %v385 = vmax.f32 %v346, %v384
    %v386 = vrot.slane %v385, 2
    %v387 = vmax.f32 %v385, %v386
    %v388 = vrot.slane %v387, 1
    %v389 = vmax.f32 %v387, %v388
    %v390 = vrot.slane %v351, 4
    %v391 = vmax.f32 %v351, %v390
    %v392 = vrot.slane %v391, 2
    %v393 = vmax.f32 %v391, %v392
    %v394 = vrot.slane %v393, 1
    %v395 = vmax.f32 %v393, %v394
    %v396 = vrot.slane %v356, 4
    %v397 = vmax.f32 %v356, %v396
    %v398 = vrot.slane %v397, 2
    %v399 = vmax.f32 %v397, %v398
    %v400 = vrot.slane %v399, 1
    %v401 = vmax.f32 %v399, %v400
    %v402 = vrot.slane %v361, 4
    %v403 = vmax.f32 %v361, %v402
    %v404 = vrot.slane %v403, 2
    %v405 = vmax.f32 %v403, %v404
    %v406 = vrot.slane %v405, 1
    %v407 = vmax.f32 %v405, %v406
    %v408 = vrot.slane %v366, 4
    %v409 = vmax.f32 %v366, %v408
    %v410 = vrot.slane %v409, 2
    %v411 = vmax.f32 %v409, %v410
    %v412 = vrot.slane %v411, 1
    %v413 = vmax.f32 %v411, %v412
    %v414 = vrot.slane %v371, 4
    %v415 = vmax.f32 %v371, %v414
    %v416 = vrot.slane %v415, 2
    %v417 = vmax.f32 %v415, %v416
    %v418 = vrot.slane %v417, 1
    %v419 = vmax.f32 %v417, %v418
    %v420 = vrot.slane %v376, 4
    %v421 = vmax.f32 %v376, %v420
    %v422 = vrot.slane %v421, 2
    %v423 = vmax.f32 %v421, %v422
    %v424 = vrot.slane %v423, 1
    %v425 = vmax.f32 %v423, %v424
    %v426 = vrot.slane %v381, 4
    %v427 = vmax.f32 %v381, %v426
    %v428 = vrot.slane %v427, 2
    %v429 = vmax.f32 %v427, %v428
    %v430 = vrot.slane %v429, 1
    %v431 = vmax.f32 %v429, %v430
    %v432 = vsub.f32 %v346, %v389
    %v433 = vsub.f32 %v351, %v395
    %v434 = vsub.f32 %v356, %v401
    %v435 = vsub.f32 %v361, %v407
    %v436 = vsub.f32 %v366, %v413
    %v437 = vsub.f32 %v371, %v419
    %v438 = vsub.f32 %v376, %v425
    %v439 = vsub.f32 %v381, %v431
    %v440 = vmul.f32 %v432, 1.442695
    %v441 = vpow.pop %v440
    %v442 = vmul.f32 %v433, 1.442695
    %v443 = vpow.pop %v442
    %v444 = vmul.f32 %v434, 1.442695
    %v445 = vpow.pop %v444
    %v446 = vmul.f32 %v435, 1.442695
    %v447 = vpow.pop %v446
    %v448 = vmul.f32 %v436, 1.442695
    %v449 = vpow.pop %v448
    %v450 = vmul.f32 %v437, 1.442695
    %v451 = vpow.pop %v450
    %v452 = vmul.f32 %v438, 1.442695
    %v453 = vpow.pop %v452
    %v454 = vmul.f32 %v439, 1.442695
    %v455 = vpow.pop %v454
    %v456 = vrot.slane %v441, 4
    %v457 = vadd.f32 %v441, %v456
    %v458 = vrot.slane %v457, 2
    %v459 = vadd.f32 %v457, %v458
    %v460 = vrot.slane %v459, 1
    %v461 = vadd.f32 %v459, %v460
    %v462 = vrot.slane %v443, 4
    %v463 = vadd.f32 %v443, %v462
    %v464 = vrot.slane %v463, 2
    %v465 = vadd.f32 %v463, %v464
    %v466 = vrot.slane %v465, 1
    %v467 = vadd.f32 %v465, %v466
    %v468 = vrot.slane %v445, 4
    %v469 = vadd.f32 %v445, %v468
    %v470 = vrot.slane %v469, 2
    %v471 = vadd.f32 %v469, %v470
    %v472 = vrot.slane %v471, 1
    %v473 = vadd.f32 %v471, %v472
    %v474 = vrot.slane %v447, 4
    %v475 = vadd.f32 %v447, %v474
    %v476 = vrot.slane %v475, 2
    %v477 = vadd.f32 %v475, %v476
    %v478 = vrot.slane %v477, 1
    %v479 = vadd.f32 %v477, %v478
    %v480 = vrot.slane %v449, 4
    %v481 = vadd.f32 %v449, %v480
    %v482 = vrot.slane %v481, 2
    %v483 = vadd.f32 %v481, %v482
    %v484 = vrot.slane %v483, 1
    %v485 = vadd.f32 %v483, %v484
    %v486 = vrot.slane %v451, 4
    %v487 = vadd.f32 %v451, %v486
    %v488 = vrot.slane %v487, 2
    %v489 = vadd.f32 %v487, %v488
    %v490 = vrot.slane %v489, 1
    %v491 = vadd.f32 %v489, %v490
    %v492 = vrot.slane %v453, 4
    %v493 = vadd.f32 %v453, %v492
    %v494 = vrot.slane %v493, 2
    %v495 = vadd.f32 %v493, %v494
    %v496 = vrot.slane %v495, 1
    %v497 = vadd.f32 %v495, %v496
    %v498 = vrot.slane %v455, 4
    %v499 = vadd.f32 %v455, %v498
    %v500 = vrot.slane %v499, 2
    %v501 = vadd.f32 %v499, %v500
    %v502 = vrot.slane %v501, 1
    %v503 = vadd.f32 %v501, %v502
    %v504 = vrcp.pop %v461
    %v505 = vrcp.pop %v467
    %v506 = vrcp.pop %v473
    %v507 = vrcp.pop %v479
    %v508 = vrcp.pop %v485
    %v509 = vrcp.pop %v491
    %v510 = vrcp.pop %v497
    %v511 = vrcp.pop %v503
    %v512 = vmul.f32 %v461, %v504
    %v513 = vmul.f32 %v467, %v505
    %v514 = vmul.f32 %v473, %v506
    %v515 = vmul.f32 %v479, %v507
    %v516 = vmul.f32 %v485, %v508
    %v517 = vmul.f32 %v491, %v509
    %v518 = vmul.f32 %v497, %v510
    %v519 = vmul.f32 %v503, %v511
    %v520 = vsub.f32 2.0, %v512
    %v521 = vsub.f32 2.0, %v513
    %v522 = vsub.f32 2.0, %v514
    %v523 = vsub.f32 2.0, %v515
    %v524 = vsub.f32 2.0, %v516
    %v525 = vsub.f32 2.0, %v517
    %v526 = vsub.f32 2.0, %v518
    %v527 = vsub.f32 2.0, %v519
    %v528 = vmul.f32 %v504, %v520
    %v529 = vmul.f32 %v505, %v521
    %v530 = vmul.f32 %v506, %v522
    %v531 = vmul.f32 %v507, %v523
    %v532 = vmul.f32 %v508, %v524
    %v533 = vmul.f32 %v509, %v525
    %v534 = vmul.f32 %v510, %v526
    %v535 = vmul.f32 %v511, %v527
    %v536 = vmul.f32 %v441, %v528
    %v537 = vmul.f32 %v443, %v529
    %v538 = vmul.f32 %v445, %v530
    %v539 = vmul.f32 %v447, %v531
    %v540 = vmul.f32 %v449, %v532
    %v541 = vmul.f32 %v451, %v533
    %v542 = vmul.f32 %v453, %v534
    %v543 = vmul.f32 %v455, %v535
    %v544 = vmul.f32 %v536, %v221
    %v545 = vmul.f32 %v537, %v226
    %v546 = vmul.f32 %v538, %v231
    %v547 = vmul.f32 %v539, %v236
    %v548 = vmul.f32 %v540, %v241
    %v549 = vmul.f32 %v541, %v246
    %v550 = vmul.f32 %v542, %v251
    %v551 = vmul.f32 %v543, %v256
    %v552 = vld [vmem:[#allocation8] sm:$0xff]
    %v553 = vld [vmem:[#allocation8 + $0x8] sm:$0xff]
    %v554 = vld [vmem:[#allocation8 + $0x10] sm:$0xff]
    %v555 = vld [vmem:[#allocation8 + $0x18] sm:$0xff]
    %v556 = vld [vmem:[#allocation8 + $0x20] sm:$0xff]
    %v557 = vld [vmem:[#allocation8 + $0x28] sm:$0xff]
    %v558 = vld [vmem:[#allocation8 + $0x30] sm:$0xff]
    %v559 = vld [vmem:[#allocation8 + $0x38] sm:$0xff]
    %v560 = vld [vmem:[#allocation8 + $0x40] sm:$0xff]
    %v561 = vld [vmem:[#allocation8 + $0x48] sm:$0xff]
    %v562 = vld [vmem:[#allocation8 + $0x50] sm:$0xff]
    %v563 = vld [vmem:[#allocation8 + $0x58] sm:$0xff]
    %v564 = vld [vmem:[#allocation8 + $0x60] sm:$0xff]
    %v565 = vld [vmem:[#allocation8 + $0x68] sm:$0xff]
    %v566 = vld [vmem:[#allocation8 + $0x70] sm:$0xff]
    %v567 = vld [vmem:[#allocation8 + $0x78] sm:$0xff]
    %v568 = vld [vmem:[#allocation8 + $0x80] sm:$0xff]
    %v569 = vld [vmem:[#allocation8 + $0x88] sm:$0xff]
    %v570 = vld [vmem:[#allocation8 + $0x90] sm:$0xff]
    %v571 = vld [vmem:[#allocation8 + $0x98] sm:$0xff]
    %v572 = vld [vmem:[#allocation8 + $0xa0] sm:$0xff]
    %v573 = vld [vmem:[#allocation8 + $0xa8] sm:$0xff]
    %v574 = vld [vmem:[#allocation8 + $0xb0] sm:$0xff]
    %v575 = vld [vmem:[#allocation8 + $0xb8] sm:$0xff]
    %v576 = vld [vmem:[#allocation8 + $0xc0] sm:$0xff]
    %v577 = vld [vmem:[#allocation8 + $0xc8] sm:$0xff]
    %v578 = vld [vmem:[#allocation8 + $0xd0] sm:$0xff]
    %v579 = vld [vmem:[#allocation8 + $0xd8] sm:$0xff]
    %v580 = vld [vmem:[#allocation8 + $0xe0] sm:$0xff]
    %v581 = vld [vmem:[#allocation8 + $0xe8] sm:$0xff]
    %v582 = vld [vmem:[#allocation8 + $0xf0] sm:$0xff]
    %v583 = vld [vmem:[#allocation8 + $0xf8] sm:$0xff]
    %v584 = vlaneseq
    %v585 = vshrl.u32 %v584, 7
    %v586 = vsub.s32 2, %v585
    %v587 = vrot.slane %v133, %v586
    %588 = vmatprep.subr.mxu0 0.0
    %589 = vmatpush1.msra.mxu0 %v552
    %590 = vmatprep.subr.mxu0 0.0
    %591 = vmatpush1.msra.mxu0 %v553
    %592 = vmatprep.subr.mxu0 0.0
    %593 = vmatpush1.msra.mxu0 %v554
    %594 = vmatprep.subr.mxu0 0.0
    %595 = vmatpush1.msra.mxu0 %v555
    %596 = vmatprep.subr.mxu0 0.0
    %597 = vmatpush1.msra.mxu0 %v556
    %598 = vmatprep.subr.mxu0 0.0
    %599 = vmatpush1.msra.mxu0 %v557
    %600 = vmatprep.subr.mxu0 0.0
    %601 = vmatpush1.msra.mxu0 %v558
    %602 = vmatprep.subr.mxu0 0.0
    %603 = vmatpush1.msra.mxu0 %v559
    %604 = vmatprep.subr.mxu0 0.0
    %605 = vmatpush1.msra.mxu0 %v560
    %606 = vmatprep.subr.mxu0 0.0
    %607 = vmatpush1.msra.mxu0 %v561
    %608 = vmatprep.subr.mxu0 0.0
    %609 = vmatpush1.msra.mxu0 %v562
    %610 = vmatprep.subr.mxu0 0.0
    %611 = vmatpush1.msra.mxu0 %v563
    %612 = vmatprep.subr.mxu0 0.0
    %613 = vmatpush1.msra.mxu0 %v564
    %614 = vmatprep.subr.mxu0 0.0
    %615 = vmatpush1.msra.mxu0 %v565
    %616 = vmatprep.subr.mxu0 0.0
    %617 = vmatpush1.msra.mxu0 %v566
    %618 = vmatprep.subr.mxu0 0.0
    %619 = vmatpush1.msra.mxu0 %v567
    %620 = vmatprep.subr.mxu0 0.0
    %621 = vmatpush1.msra.mxu0 %v568
    %622 = vmatprep.subr.mxu0 0.0
    %623 = vmatpush1.msra.mxu0 %v569
    %624 = vmatprep.subr.mxu0 0.0
    %625 = vmatpush1.msra.mxu0 %v570
    %626 = vmatprep.subr.mxu0 0.0
    %627 = vmatpush1.msra.mxu0 %v571
    %628 = vmatprep.subr.mxu0 0.0
    %629 = vmatpush1.msra.mxu0 %v572
    %630 = vmatprep.subr.mxu0 0.0
    %631 = vmatpush1.msra.mxu0 %v573
    %632 = vmatprep.subr.mxu0 0.0
    %633 = vmatpush1.msra.mxu0 %v574
    %634 = vmatprep.subr.mxu0 0.0
    %635 = vmatpush1.msra.mxu0 %v575
    %636 = vmatprep.subr.mxu0 0.0
    %637 = vmatpush1.msra.mxu0 %v576
    %638 = vmatprep.subr.mxu0 0.0
    %639 = vmatpush1.msra.mxu0 %v577
    %640 = vmatprep.subr.mxu0 0.0
    %641 = vmatpush1.msra.mxu0 %v578
    %642 = vmatprep.subr.mxu0 0.0
    %643 = vmatpush1.msra.mxu0 %v579
    %644 = vmatprep.subr.mxu0 0.0
    %645 = vmatpush1.msra.mxu0 %v580
    %646 = vmatprep.subr.mxu0 0.0
    %647 = vmatpush1.msra.mxu0 %v581
    %648 = vmatprep.subr.mxu0 0.0
    %649 = vmatpush1.msra.mxu0 %v582
    %650 = vmatprep.subr.mxu0 0.0
    %651 = vmatpush1.msra.mxu0 %v583
    %652 = vmatprep.mubr.f32.mxu0 %v221
    %653 = vmatmul.mubr.f32.gmra.mrb[0].mxu0 %v125
    %v654 = vpop.f32.mrb[0].mxu0
    %v655 = vadd.f32 %v587, %v654
    %v656 = vpop.f32.mrb[0].mxu0
    %657 = vmatprep.mubr.f32.mxu0 %v226
    %658 = vmatmul.mubr.f32.gmra.mrb[0].mxu0 %v126
    %v659 = vpop.f32.mrb[0].mxu0
    %v660 = vadd.f32 %v587, %v659
    %v661 = vpop.f32.mrb[0].mxu0
    %662 = vmatprep.mubr.f32.mxu0 %v231
    %663 = vmatmul.mubr.f32.gmra.mrb[0].mxu0 %v127
    %v664 = vpop.f32.mrb[0].mxu0
    %v665 = vadd.f32 %v587, %v664
    %v666 = vpop.f32.mrb[0].mxu0
    %667 = vmatprep.mubr.f32.mxu0 %v236
    %668 = vmatmul.mubr.f32.gmra.mrb[0].mxu0 %v128
    %v669 = vpop.f32.mrb[0].mxu0
    %v670 = vadd.f32 %v587, %v669
    %v671 = vpop.f32.mrb[0].mxu0
    %672 = vmatprep.mubr.f32.mxu0 %v241
    %673 = vmatmul.mubr.f32.gmra.mrb[0].mxu0 %v129
    %v674 = vpop.f32.mrb[0].mxu0
    %v675 = vadd.f32 %v587, %v674
    %v676 = vpop.f32.mrb[0].mxu0
    %677 = vmatprep.mubr.f32.mxu0 %v246
    %678 = vmatmul.mubr.f32.gmra.mrb[0].mxu0 %v130
    %v679 = vpop.f32.mrb[0].mxu0
    %v680 = vadd.f32 %v587, %v679
    %v681 = vpop.f32.mrb[0].mxu0
    %682 = vmatprep.mubr.f32.mxu0 %v251
    %683 = vmatmul.mubr.f32.gmra.mrb[0].mxu0 %v131
    %v684 = vpop.f32.mrb[0].mxu0
    %v685 = vadd.f32 %v587, %v684
    %v686 = vpop.f32.mrb[0].mxu0
    %687 = vmatprep.mubr.f32.mxu0 %v256
    %688 = vmatmul.mubr.f32.gmra.mrb[0].mxu0 %v132
    %v689 = vpop.f32.mrb[0].mxu0
    %v690 = vadd.f32 %v587, %v689
    %v691 = vpop.f32.mrb[0].mxu0
    %692 = vdwg.mxu0
    %v693 = vld [vmem:[#allocation10] sm:$0xff]
    %v694 = vld [vmem:[#allocation10 + $0x8] sm:$0xff]
    %v695 = vld [vmem:[#allocation10 + $0x10] sm:$0xff]
    %v696 = vld [vmem:[#allocation10 + $0x18] sm:$0xff]
    %v697 = vld [vmem:[#allocation10 + $0x20] sm:$0xff]
    %v698 = vld [vmem:[#allocation10 + $0x28] sm:$0xff]
    %v699 = vld [vmem:[#allocation10 + $0x30] sm:$0xff]
    %v700 = vld [vmem:[#allocation10 + $0x38] sm:$0xff]
    %v701 = vld [vmem:[#allocation10 + $0x40] sm:$0xff]
    %v702 = vld [vmem:[#allocation10 + $0x48] sm:$0xff]
    %v703 = vld [vmem:[#allocation10 + $0x50] sm:$0xff]
    %v704 = vld [vmem:[#allocation10 + $0x58] sm:$0xff]
    %v705 = vld [vmem:[#allocation10 + $0x60] sm:$0xff]
    %v706 = vld [vmem:[#allocation10 + $0x68] sm:$0xff]
    %v707 = vld [vmem:[#allocation10 + $0x70] sm:$0xff]
    %v708 = vld [vmem:[#allocation10 + $0x78] sm:$0xff]
    %v709 = vld [vmem:[#allocation10 + $0x80] sm:$0xff]
    %v710 = vld [vmem:[#allocation10 + $0x88] sm:$0xff]
    %v711 = vld [vmem:[#allocation10 + $0x90] sm:$0xff]
    %v712 = vld [vmem:[#allocation10 + $0x98] sm:$0xff]
    %v713 = vld [vmem:[#allocation10 + $0xa0] sm:$0xff]
    %v714 = vld [vmem:[#allocation10 + $0xa8] sm:$0xff]
    %v715 = vld [vmem:[#allocation10 + $0xb0] sm:$0xff]
    %v716 = vld [vmem:[#allocation10 + $0xb8] sm:$0xff]
    %v717 = vld [vmem:[#allocation10 + $0xc0] sm:$0xff]
    %v718 = vld [vmem:[#allocation10 + $0xc8] sm:$0xff]
    %v719 = vld [vmem:[#allocation10 + $0xd0] sm:$0xff]
    %v720 = vld [vmem:[#allocation10 + $0xd8] sm:$0xff]
    %v721 = vld [vmem:[#allocation10 + $0xe0] sm:$0xff]
    %v722 = vld [vmem:[#allocation10 + $0xe8] sm:$0xff]
    %v723 = vld [vmem:[#allocation10 + $0xf0] sm:$0xff]
    %v724 = vld [vmem:[#allocation10 + $0xf8] sm:$0xff]
    %v725 = vlaneseq
    %v726 = vshrl.u32 %v725, 7
    %v727 = vsub.s32 3, %v726
    %v728 = vrot.slane %v133, %v727
    %729 = vmatprep.subr.mxu0 0.0
    %730 = vmatpush1.msra.mxu0 %v693
    %731 = vmatprep.subr.mxu0 0.0
    %732 = vmatpush1.msra.mxu0 %v694
    %733 = vmatprep.subr.mxu0 0.0
    %734 = vmatpush1.msra.mxu0 %v695
    %735 = vmatprep.subr.mxu0 0.0
    %736 = vmatpush1.msra.mxu0 %v696
    %737 = vmatprep.subr.mxu0 0.0
    %738 = vmatpush1.msra.mxu0 %v697
    %739 = vmatprep.subr.mxu0 0.0
    %740 = vmatpush1.msra.mxu0 %v698
    %741 = vmatprep.subr.mxu0 0.0
    %742 = vmatpush1.msra.mxu0 %v699
    %743 = vmatprep.subr.mxu0 0.0
    %744 = vmatpush1.msra.mxu0 %v700
    %745 = vmatprep.subr.mxu0 0.0
    %746 = vmatpush1.msra.mxu0 %v701
    %747 = vmatprep.subr.mxu0 0.0
    %748 = vmatpush1.msra.mxu0 %v702
    %749 = vmatprep.subr.mxu0 0.0
    %750 = vmatpush1.msra.mxu0 %v703
    %751 = vmatprep.subr.mxu0 0.0
    %752 = vmatpush1.msra.mxu0 %v704
    %753 = vmatprep.subr.mxu0 0.0
    %754 = vmatpush1.msra.mxu0 %v705
    %755 = vmatprep.subr.mxu0 0.0
    %756 = vmatpush1.msra.mxu0 %v706
    %757 = vmatprep.subr.mxu0 0.0
    %758 = vmatpush1.msra.mxu0 %v707
    %759 = vmatprep.subr.mxu0 0.0
    %760 = vmatpush1.msra.mxu0 %v708
    %761 = vmatprep.subr.mxu0 0.0
    %762 = vmatpush1.msra.mxu0 %v709
    %763 = vmatprep.subr.mxu0 0.0
    %764 = vmatpush1.msra.mxu0 %v710
    %765 = vmatprep.subr.mxu0 0.0
    %766 = vmatpush1.msra.mxu0 %v711
    %767 = vmatprep.subr.mxu0 0.0
    %768 = vmatpush1.msra.mxu0 %v712
    %769 = vmatprep.subr.mxu0 0.0
    %770 = vmatpush1.msra.mxu0 %v713
    %771 = vmatprep.subr.mxu0 0.0
    %772 = vmatpush1.msra.mxu0 %v714
    %773 = vmatprep.subr.mxu0 0.0
    %774 = vmatpush1.msra.mxu0 %v715
    %775 = vmatprep.subr.mxu0 0.0
    %776 = vmatpush1.msra.mxu0 %v716
    %777 = vmatprep.subr.mxu0 0.0
    %778 = vmatpush1.msra.mxu0 %v717
    %779 = vmatprep.subr.mxu0 0.0
    %780 = vmatpush1.msra.mxu0 %v718
    %781 = vmatprep.subr.mxu0 0.0
    %782 = vmatpush1.msra.mxu0 %v719
    %783 = vmatprep.subr.mxu0 0.0
    %784 = vmatpush1.msra.mxu0 %v720
    %785 = vmatprep.subr.mxu0 0.0
    %786 = vmatpush1.msra.mxu0 %v721
    %787 = vmatprep.subr.mxu0 0.0
    %788 = vmatpush1.msra.mxu0 %v722
    %789 = vmatprep.subr.mxu0 0.0
    %790 = vmatpush1.msra.mxu0 %v723
    %791 = vmatprep.subr.mxu0 0.0
    %792 = vmatpush1.msra.mxu0 %v724
    %793 = vmatprep.mubr.f32.mxu0 %v655
    %794 = vmatmul.mubr.f32.gmra.mrb[0].mxu0 %v544
    %v795 = vpop.f32.mrb[0].mxu0
    %v796 = vadd.f32 %v728, %v795
    %v797 = vpop.f32.mrb[0].mxu0
    %798 = vmatprep.mubr.f32.mxu0 %v660
    %799 = vmatmul.mubr.f32.gmra.mrb[0].mxu0 %v545
    %v800 = vpop.f32.mrb[0].mxu0
    %v801 = vadd.f32 %v728, %v800
    %v802 = vpop.f32.mrb[0].mxu0
    %803 = vmatprep.mubr.f32.mxu0 %v665
    %804 = vmatmul.mubr.f32.gmra.mrb[0].mxu0 %v546
    %v805 = vpop.f32.mrb[0].mxu0
    %v806 = vadd.f32 %v728, %v805
    %v807 = vpop.f32.mrb[0].mxu0
    %808 = vmatprep.mubr.f32.mxu0 %v670
    %809 = vmatmul.mubr.f32.gmra.mrb[0].mxu0 %v547
    %v810 = vpop.f32.mrb[0].mxu0
    %v811 = vadd.f32 %v728, %v810
    %v812 = vpop.f32.mrb[0].mxu0
    %813 = vmatprep.mubr.f32.mxu0 %v675
    %814 = vmatmul.mubr.f32.gmra.mrb[0].mxu0 %v548
    %v815 = vpop.f32.mrb[0].mxu0
    %v816 = vadd.f32 %v728, %v815
    %v817 = vpop.f32.mrb[0].mxu0
    %818 = vmatprep.mubr.f32.mxu0 %v680
    %819 = vmatmul.mubr.f32.gmra.mrb[0].mxu0 %v549
    %v820 = vpop.f32.mrb[0].mxu0
    %v821 = vadd.f32 %v728, %v820
    %v822 = vpop.f32.mrb[0].mxu0
    %823 = vmatprep.mubr.f32.mxu0 %v685
    %824 = vmatmul.mubr.f32.gmra.mrb[0].mxu0 %v550
    %v825 = vpop.f32.mrb[0].mxu0
    %v826 = vadd.f32 %v728, %v825
    %v827 = vpop.f32.mrb[0].mxu0
    %828 = vmatprep.mubr.f32.mxu0 %v690
    %829 = vmatmul.mubr.f32.gmra.mrb[0].mxu0 %v551
    %v830 = vpop.f32.mrb[0].mxu0
    %v831 = vadd.f32 %v728, %v830
    %v832 = vpop.f32.mrb[0].mxu0
    %833 = vdwg.mxu0
    %v834 = vmax.f32 %v796, 0.0
    %v835 = vmax.f32 %v801, 0.0
    %v836 = vmax.f32 %v806, 0.0
    %v837 = vmax.f32 %v811, 0.0
    %v838 = vmax.f32 %v816, 0.0
    %v839 = vmax.f32 %v821, 0.0
    %v840 = vmax.f32 %v826, 0.0
    %v841 = vmax.f32 %v831, 0.0
    %v842 = vld [vmem:[#allocation11] sm:$0xff]
    %v843 = vld [vmem:[#allocation11 + $0x8] sm:$0xff]
    %v844 = vld [vmem:[#allocation11 + $0x10] sm:$0xff]
    %v845 = vld [vmem:[#allocation11 + $0x18] sm:$0xff]
    %v846 = vld [vmem:[#allocation11 + $0x20] sm:$0xff]
    %v847 = vld [vmem:[#allocation11 + $0x28] sm:$0xff]
    %v848 = vld [vmem:[#allocation11 + $0x30] sm:$0xff]
    %v849 = vld [vmem:[#allocation11 + $0x38] sm:$0xff]
    %v850 = vld [vmem:[#allocation11 + $0x40] sm:$0xff]
    %v851 = vld [vmem:[#allocation11 + $0x48] sm:$0xff]
    %v852 = vld [vmem:[#allocation11 + $0x50] sm:$0xff]
    %v853 = vld [vmem:[#allocation11 + $0x58] sm:$0xff]
    %v854 = vld [vmem:[#allocation11 + $0x60] sm:$0xff]
    %v855 = vld [vmem:[#allocation11 + $0x68] sm:$0xff]
    %v856 = vld [vmem:[#allocation11 + $0x70] sm:$0xff]
    %v857 = vld [vmem:[#allocation11 + $0x78] sm:$0xff]
    %v858 = vlaneseq
    %v859 = vshrl.u32 %v858, 7
    %v860 = vsub.s32 4, %v859
    %v861 = vrot.slane %v133, %v860
    %862 = vmatprep.subr.mxu0 0.0
    %863 = vmatpush1.msra.mxu0 %v842
    %864 = vmatprep.subr.mxu0 0.0
    %865 = vmatpush1.msra.mxu0 %v843
    %866 = vmatprep.subr.mxu0 0.0
    %867 = vmatpush1.msra.mxu0 %v844
    %868 = vmatprep.subr.mxu0 0.0
    %869 = vmatpush1.msra.mxu0 %v845
    %870 = vmatprep.subr.mxu0 0.0
    %871 = vmatpush1.msra.mxu0 %v846
    %872 = vmatprep.subr.mxu0 0.0
    %873 = vmatpush1.msra.mxu0 %v847
    %874 = vmatprep.subr.mxu0 0.0
    %875 = vmatpush1.msra.mxu0 %v848
    %876 = vmatprep.subr.mxu0 0.0
    %877 = vmatpush1.msra.mxu0 %v849
    %878 = vmatprep.subr.mxu0 0.0
    %879 = vmatpush1.msra.mxu0 %v850
    %880 = vmatprep.subr.mxu0 0.0
    %881 = vmatpush1.msra.mxu0 %v851
    %882 = vmatprep.subr.mxu0 0.0
    %883 = vmatpush1.msra.mxu0 %v852
    %884 = vmatprep.subr.mxu0 0.0
    %885 = vmatpush1.msra.mxu0 %v853
    %886 = vmatprep.subr.mxu0 0.0
    %887 = vmatpush1.msra.mxu0 %v854
    %888 = vmatprep.subr.mxu0 0.0
    %889 = vmatpush1.msra.mxu0 %v855
    %890 = vmatprep.subr.mxu0 0.0
    %891 = vmatpush1.msra.mxu0 %v856
    %892 = vmatprep.subr.mxu0 0.0
    %893 = vmatpush1.msra.mxu0 %v857
    %894 = vmatprep.subr.mxu0 0.0
    %895 = vmatpush1.msra.mxu0 0.0
    %896 = vmatprep.subr.mxu0 0.0
    %897 = vmatpush1.msra.mxu0 0.0
    %898 = vmatprep.subr.mxu0 0.0
    %899 = vmatpush1.msra.mxu0 0.0
    %900 = vmatprep.subr.mxu0 0.0
    %901 = vmatpush1.msra.mxu0 0.0
    %902 = vmatprep.subr.mxu0 0.0
    %903 = vmatpush1.msra.mxu0 0.0
    %904 = vmatprep.subr.mxu0 0.0
    %905 = vmatpush1.msra.mxu0 0.0
    %906 = vmatprep.subr.mxu0 0.0
    %907 = vmatpush1.msra.mxu0 0.0
    %908 = vmatprep.subr.mxu0 0.0
    %909 = vmatpush1.msra.mxu0 0.0
    %910 = vmatprep.subr.mxu0 0.0
    %911 = vmatpush1.msra.mxu0 0.0
    %912 = vmatprep.subr.mxu0 0.0
    %913 = vmatpush1.msra.mxu0 0.0
    %914 = vmatprep.subr.mxu0 0.0
    %915 = vmatpush1.msra.mxu0 0.0
    %916 = vmatprep.subr.mxu0 0.0
    %917 = vmatpush1.msra.mxu0 0.0
    %918 = vmatprep.subr.mxu0 0.0
    %919 = vmatpush1.msra.mxu0 0.0
    %920 = vmatprep.subr.mxu0 0.0
    %921 = vmatpush1.msra.mxu0 0.0
    %922 = vmatprep.subr.mxu0 0.0
    %923 = vmatpush1.msra.mxu0 0.0
    %924 = vmatprep.subr.mxu0 0.0
    %925 = vmatpush1.msra.mxu0 0.0
    %926 = vmatprep.mubr.f32.mxu0 0.0
    %927 = vmatmul.mubr.f32.gmra.mrb[0].mxu0 %v834
    %v928 = vpop.f32.mrb[0].mxu0
    %v929 = vadd.f32 %v861, %v928
    %v930 = vpop.f32.mrb[0].mxu0
    %931 = vmatprep.mubr.f32.mxu0 0.0
    %932 = vmatmul.mubr.f32.gmra.mrb[0].mxu0 %v835
    %v933 = vpop.f32.mrb[0].mxu0
    %v934 = vadd.f32 %v861, %v933
    %v935 = vpop.f32.mrb[0].mxu0
    %936 = vmatprep.mubr.f32.mxu0 0.0
    %937 = vmatmul.mubr.f32.gmra.mrb[0].mxu0 %v836
    %v938 = vpop.f32.mrb[0].mxu0
    %v939 = vadd.f32 %v861, %v938
    %v940 = vpop.f32.mrb[0].mxu0
    %941 = vmatprep.mubr.f32.mxu0 0.0
    %942 = vmatmul.mubr.f32.gmra.mrb[0].mxu0 %v837
    %v943 = vpop.f32.mrb[0].mxu0
    %v944 = vadd.f32 %v861, %v943
    %v945 = vpop.f32.mrb[0].mxu0
    %946 = vmatprep.mubr.f32.mxu0 0.0
    %947 = vmatmul.mubr.f32.gmra.mrb[0].mxu0 %v838
    %v948 = vpop.f32.mrb[0].mxu0
    %v949 = vadd.f32 %v861, %v948
    %v950 = vpop.f32.mrb[0].mxu0
    %951 = vmatprep.mubr.f32.mxu0 0.0
    %952 = vmatmul.mubr.f32.gmra.mrb[0].mxu0 %v839
    %v953 = vpop.f32.mrb[0].mxu0
    %v954 = vadd.f32 %v861, %v953
    %v955 = vpop.f32.mrb[0].mxu0
    %956 = vmatprep.mubr.f32.mxu0 0.0
    %957 = vmatmul.mubr.f32.gmra.mrb[0].mxu0 %v840
    %v958 = vpop.f32.mrb[0].mxu0
    %v959 = vadd.f32 %v861, %v958
    %v960 = vpop.f32.mrb[0].mxu0
    %961 = vmatprep.mubr.f32.mxu0 0.0
    %962 = vmatmul.mubr.f32.gmra.mrb[0].mxu0 %v841
    %v963 = vpop.f32.mrb[0].mxu0
    %v964 = vadd.f32 %v861, %v963
    %v965 = vpop.f32.mrb[0].mxu0
    %966 = vdwg.mxu0
    %v967 = vrot.slane %v929, 4
    %v968 = vmax.f32 %v929, %v967
    %v969 = vrot.slane %v968, 2
    %v970 = vmax.f32 %v968, %v969
    %v971 = vrot.slane %v970, 1
    %v972 = vmax.f32 %v970, %v971
    %v973 = vrot.slane %v934, 4
    %v974 = vmax.f32 %v934, %v973
    %v975 = vrot.slane %v974, 2
    %v976 = vmax.f32 %v974, %v975
    %v977 = vrot.slane %v976, 1
    %v978 = vmax.f32 %v976, %v977
    %v979 = vrot.slane %v939, 4
    %v980 = vmax.f32 %v939, %v979
    %v981 = vrot.slane %v980, 2
    %v982 = vmax.f32 %v980, %v981
    %v983 = vrot.slane %v982, 1
    %v984 = vmax.f32 %v982, %v983
    %v985 = vrot.slane %v944, 4
    %v986 = vmax.f32 %v944, %v985
    %v987 = vrot.slane %v986, 2
    %v988 = vmax.f32 %v986, %v987
    %v989 = vrot.slane %v988, 1
    %v990 = vmax.f32 %v988, %v989
    %v991 = vrot.slane %v949, 4
    %v992 = vmax.f32 %v949, %v991
    %v993 = vrot.slane %v992, 2
    %v994 = vmax.f32 %v992, %v993
    %v995 = vrot.slane %v994, 1
    %v996 = vmax.f32 %v994, %v995
    %v997 = vrot.slane %v954, 4
    %v998 = vmax.f32 %v954, %v997
    %v999 = vrot.slane %v998, 2
    %v1000 = vmax.f32 %v998, %v999
    %v1001 = vrot.slane %v1000, 1
    %v1002 = vmax.f32 %v1000, %v1001
    %v1003 = vrot.slane %v959, 4
    %v1004 = vmax.f32 %v959, %v1003
    %v1005 = vrot.slane %v1004, 2
    %v1006 = vmax.f32 %v1004, %v1005
    %v1007 = vrot.slane %v1006, 1
    %v1008 = vmax.f32 %v1006, %v1007
    %v1009 = vrot.slane %v964, 4
    %v1010 = vmax.f32 %v964, %v1009
    %v1011 = vrot.slane %v1010, 2
    %v1012 = vmax.f32 %v1010, %v1011
    %v1013 = vrot.slane %v1012, 1
    %v1014 = vmax.f32 %v1012, %v1013
    %v1015 = vsub.f32 %v929, %v972
    %v1016 = vsub.f32 %v934, %v978
    %v1017 = vsub.f32 %v939, %v984
    %v1018 = vsub.f32 %v944, %v990
    %v1019 = vsub.f32 %v949, %v996
    %v1020 = vsub.f32 %v954, %v1002
    %v1021 = vsub.f32 %v959, %v1008
    %v1022 = vsub.f32 %v964, %v1014
    %v1023 = vmul.f32 %v1015, 1.442695
    %v1024 = vpow.pop %v1023
    %v1025 = vmul.f32 %v1016, 1.442695
    %v1026 = vpow.pop %v1025
    %v1027 = vmul.f32 %v1017, 1.442695
    %v1028 = vpow.pop %v1027
    %v1029 = vmul.f32 %v1018, 1.442695
    %v1030 = vpow.pop %v1029
    %v1031 = vmul.f32 %v1019, 1.442695
    %v1032 = vpow.pop %v1031
    %v1033 = vmul.f32 %v1020, 1.442695
    %v1034 = vpow.pop %v1033
    %v1035 = vmul.f32 %v1021, 1.442695
    %v1036 = vpow.pop %v1035
    %v1037 = vmul.f32 %v1022, 1.442695
    %v1038 = vpow.pop %v1037
    %v1039 = vrot.slane %v1024, 4
    %v1040 = vadd.f32 %v1024, %v1039
    %v1041 = vrot.slane %v1040, 2
    %v1042 = vadd.f32 %v1040, %v1041
    %v1043 = vrot.slane %v1042, 1
    %v1044 = vadd.f32 %v1042, %v1043
    %v1045 = vrot.slane %v1026, 4
    %v1046 = vadd.f32 %v1026, %v1045
    %v1047 = vrot.slane %v1046, 2
    %v1048 = vadd.f32 %v1046, %v1047
    %v1049 = vrot.slane %v1048, 1
    %v1050 = vadd.f32 %v1048, %v1049
    %v1051 = vrot.slane %v1028, 4
    %v1052 = vadd.f32 %v1028, %v1051
    %v1053 = vrot.slane %v1052, 2
    %v1054 = vadd.f32 %v1052, %v1053
    %v1055 = vrot.slane %v1054, 1
    %v1056 = vadd.f32 %v1054, %v1055
    %v1057 = vrot.slane %v1030, 4
    %v1058 = vadd.f32 %v1030, %v1057
    %v1059 = vrot.slane %v1058, 2
    %v1060 = vadd.f32 %v1058, %v1059
    %v1061 = vrot.slane %v1060, 1
    %v1062 = vadd.f32 %v1060, %v1061
    %v1063 = vrot.slane %v1032, 4
    %v1064 = vadd.f32 %v1032, %v1063
    %v1065 = vrot.slane %v1064, 2
    %v1066 = vadd.f32 %v1064, %v1065
    %v1067 = vrot.slane %v1066, 1
    %v1068 = vadd.f32 %v1066, %v1067
    %v1069 = vrot.slane %v1034, 4
    %v1070 = vadd.f32 %v1034, %v1069
    %v1071 = vrot.slane %v1070, 2
    %v1072 = vadd.f32 %v1070, %v1071
    %v1073 = vrot.slane %v1072, 1
    %v1074 = vadd.f32 %v1072, %v1073
    %v1075 = vrot.slane %v1036, 4
    %v1076 = vadd.f32 %v1036, %v1075
    %v1077 = vrot.slane %v1076, 2
    %v1078 = vadd.f32 %v1076, %v1077
    %v1079 = vrot.slane %v1078, 1
    %v1080 = vadd.f32 %v1078, %v1079
    %v1081 = vrot.slane %v1038, 4
    %v1082 = vadd.f32 %v1038, %v1081
    %v1083 = vrot.slane %v1082, 2
    %v1084 = vadd.f32 %v1082, %v1083
    %v1085 = vrot.slane %v1084, 1
    %v1086 = vadd.f32 %v1084, %v1085
    %v1087 = vrcp.pop %v1044
    %v1088 = vrcp.pop %v1050
    %v1089 = vrcp.pop %v1056
    %v1090 = vrcp.pop %v1062
    %v1091 = vrcp.pop %v1068
    %v1092 = vrcp.pop %v1074
    %v1093 = vrcp.pop %v1080
    %v1094 = vrcp.pop %v1086
    %v1095 = vmul.f32 %v1044, %v1087
    %v1096 = vmul.f32 %v1050, %v1088
    %v1097 = vmul.f32 %v1056, %v1089
    %v1098 = vmul.f32 %v1062, %v1090
    %v1099 = vmul.f32 %v1068, %v1091
    %v1100 = vmul.f32 %v1074, %v1092
    %v1101 = vmul.f32 %v1080, %v1093
    %v1102 = vmul.f32 %v1086, %v1094
    %v1103 = vsub.f32 2.0, %v1095
    %v1104 = vsub.f32 2.0, %v1096
    %v1105 = vsub.f32 2.0, %v1097
    %v1106 = vsub.f32 2.0, %v1098
    %v1107 = vsub.f32 2.0, %v1099
    %v1108 = vsub.f32 2.0, %v1100
    %v1109 = vsub.f32 2.0, %v1101
    %v1110 = vsub.f32 2.0, %v1102
    %v1111 = vmul.f32 %v1087, %v1103
    %v1112 = vmul.f32 %v1088, %v1104
    %v1113 = vmul.f32 %v1089, %v1105
    %v1114 = vmul.f32 %v1090, %v1106
    %v1115 = vmul.f32 %v1091, %v1107
    %v1116 = vmul.f32 %v1092, %v1108
    %v1117 = vmul.f32 %v1093, %v1109
    %v1118 = vmul.f32 %v1094, %v1110
    %v1119 = vmul.f32 %v1024, %v1111
    %v1120 = vmul.f32 %v1026, %v1112
    %v1121 = vmul.f32 %v1028, %v1113
    %v1122 = vmul.f32 %v1030, %v1114
    %v1123 = vmul.f32 %v1032, %v1115
    %v1124 = vmul.f32 %v1034, %v1116
    %v1125 = vmul.f32 %v1036, %v1117
    %v1126 = vmul.f32 %v1038, %v1118
    %v1127 = vmul.f32 %v1119, %v125
    %v1128 = vmul.f32 %v1120, %v126
    %v1129 = vmul.f32 %v1121, %v127
    %v1130 = vmul.f32 %v1122, %v128
    %v1131 = vmul.f32 %v1123, %v129
    %v1132 = vmul.f32 %v1124, %v130
    %v1133 = vmul.f32 %v1125, %v131
    %v1134 = vmul.f32 %v1126, %v132
    %v1135 = vld [vmem:[#allocation13] sm:$0xff]
    %v1136 = vld [vmem:[#allocation13 + $0x8] sm:$0xff]
    %v1137 = vld [vmem:[#allocation13 + $0x10] sm:$0xff]
    %v1138 = vld [vmem:[#allocation13 + $0x18] sm:$0xff]
    %v1139 = vld [vmem:[#allocation13 + $0x20] sm:$0xff]
    %v1140 = vld [vmem:[#allocation13 + $0x28] sm:$0xff]
    %v1141 = vld [vmem:[#allocation13 + $0x30] sm:$0xff]
    %v1142 = vld [vmem:[#allocation13 + $0x38] sm:$0xff]
    %v1143 = vld [vmem:[#allocation13 + $0x40] sm:$0xff]
    %v1144 = vld [vmem:[#allocation13 + $0x48] sm:$0xff]
    %v1145 = vld [vmem:[#allocation13 + $0x50] sm:$0xff]
    %v1146 = vld [vmem:[#allocation13 + $0x58] sm:$0xff]
    %v1147 = vld [vmem:[#allocation13 + $0x60] sm:$0xff]
    %v1148 = vld [vmem:[#allocation13 + $0x68] sm:$0xff]
    %v1149 = vld [vmem:[#allocation13 + $0x70] sm:$0xff]
    %v1150 = vld [vmem:[#allocation13 + $0x78] sm:$0xff]
    %v1151 = vld [vmem:[#allocation13 + $0x80] sm:$0xff]
    %v1152 = vld [vmem:[#allocation13 + $0x88] sm:$0xff]
    %v1153 = vld [vmem:[#allocation13 + $0x90] sm:$0xff]
    %v1154 = vld [vmem:[#allocation13 + $0x98] sm:$0xff]
    %v1155 = vld [vmem:[#allocation13 + $0xa0] sm:$0xff]
    %v1156 = vld [vmem:[#allocation13 + $0xa8] sm:$0xff]
    %v1157 = vld [vmem:[#allocation13 + $0xb0] sm:$0xff]
    %v1158 = vld [vmem:[#allocation13 + $0xb8] sm:$0xff]
    %v1159 = vld [vmem:[#allocation13 + $0xc0] sm:$0xff]
    %v1160 = vld [vmem:[#allocation13 + $0xc8] sm:$0xff]
    %v1161 = vld [vmem:[#allocation13 + $0xd0] sm:$0xff]
    %v1162 = vld [vmem:[#allocation13 + $0xd8] sm:$0xff]
    %v1163 = vld [vmem:[#allocation13 + $0xe0] sm:$0xff]
    %v1164 = vld [vmem:[#allocation13 + $0xe8] sm:$0xff]
    %v1165 = vld [vmem:[#allocation13 + $0xf0] sm:$0xff]
    %v1166 = vld [vmem:[#allocation13 + $0xf8] sm:$0xff]
    %v1167 = vlaneseq
    %v1168 = vshrl.u32 %v1167, 7
    %v1169 = vsub.s32 5, %v1168
    %v1170 = vrot.slane %v133, %v1169
    %1171 = vmatprep.subr.mxu0 0.0
    %1172 = vmatpush1.msra.mxu0 %v1135
    %1173 = vmatprep.subr.mxu0 0.0
    %1174 = vmatpush1.msra.mxu0 %v1136
    %1175 = vmatprep.subr.mxu0 0.0
    %1176 = vmatpush1.msra.mxu0 %v1137
    %1177 = vmatprep.subr.mxu0 0.0
    %1178 = vmatpush1.msra.mxu0 %v1138
    %1179 = vmatprep.subr.mxu0 0.0
    %1180 = vmatpush1.msra.mxu0 %v1139
    %1181 = vmatprep.subr.mxu0 0.0
    %1182 = vmatpush1.msra.mxu0 %v1140
    %1183 = vmatprep.subr.mxu0 0.0
    %1184 = vmatpush1.msra.mxu0 %v1141
    %1185 = vmatprep.subr.mxu0 0.0
    %1186 = vmatpush1.msra.mxu0 %v1142
    %1187 = vmatprep.subr.mxu0 0.0
    %1188 = vmatpush1.msra.mxu0 %v1143
    %1189 = vmatprep.subr.mxu0 0.0
    %1190 = vmatpush1.msra.mxu0 %v1144
    %1191 = vmatprep.subr.mxu0 0.0
    %1192 = vmatpush1.msra.mxu0 %v1145
    %1193 = vmatprep.subr.mxu0 0.0
    %1194 = vmatpush1.msra.mxu0 %v1146
    %1195 = vmatprep.subr.mxu0 0.0
    %1196 = vmatpush1.msra.mxu0 %v1147
    %1197 = vmatprep.subr.mxu0 0.0
    %1198 = vmatpush1.msra.mxu0 %v1148
    %1199 = vmatprep.subr.mxu0 0.0
    %1200 = vmatpush1.msra.mxu0 %v1149
    %1201 = vmatprep.subr.mxu0 0.0
    %1202 = vmatpush1.msra.mxu0 %v1150
    %1203 = vmatprep.subr.mxu0 0.0
    %1204 = vmatpush1.msra.mxu0 %v1151
    %1205 = vmatprep.subr.mxu0 0.0
    %1206 = vmatpush1.msra.mxu0 %v1152
    %1207 = vmatprep.subr.mxu0 0.0
    %1208 = vmatpush1.msra.mxu0 %v1153
    %1209 = vmatprep.subr.mxu0 0.0
    %1210 = vmatpush1.msra.mxu0 %v1154
    %1211 = vmatprep.subr.mxu0 0.0
    %1212 = vmatpush1.msra.mxu0 %v1155
    %1213 = vmatprep.subr.mxu0 0.0
    %1214 = vmatpush1.msra.mxu0 %v1156
    %1215 = vmatprep.subr.mxu0 0.0
    %1216 = vmatpush1.msra.mxu0 %v1157
    %1217 = vmatprep.subr.mxu0 0.0
    %1218 = vmatpush1.msra.mxu0 %v1158
    %1219 = vmatprep.subr.mxu0 0.0
    %1220 = vmatpush1.msra.mxu0 %v1159
    %1221 = vmatprep.subr.mxu0 0.0
    %1222 = vmatpush1.msra.mxu0 %v1160
    %1223 = vmatprep.subr.mxu0 0.0
    %1224 = vmatpush1.msra.mxu0 %v1161
    %1225 = vmatprep.subr.mxu0 0.0
    %1226 = vmatpush1.msra.mxu0 %v1162
    %1227 = vmatprep.subr.mxu0 0.0
    %1228 = vmatpush1.msra.mxu0 %v1163
    %1229 = vmatprep.subr.mxu0 0.0
    %1230 = vmatpush1.msra.mxu0 %v1164
    %1231 = vmatprep.subr.mxu0 0.0
    %1232 = vmatpush1.msra.mxu0 %v1165
    %1233 = vmatprep.subr.mxu0 0.0
    %1234 = vmatpush1.msra.mxu0 %v1166
    %1235 = vmatprep.mubr.f32.mxu0 %v125
    %1236 = vmatmul.mubr.f32.gmra.mrb[0].mxu0 %v1127
    %v1237 = vpop.f32.mrb[0].mxu0
    %v1238 = vadd.f32 %v1170, %v1237
    %v1239 = vpop.f32.mrb[0].mxu0
    %1240 = vmatprep.mubr.f32.mxu0 %v126
    %1241 = vmatmul.mubr.f32.gmra.mrb[0].mxu0 %v1128
    %v1242 = vpop.f32.mrb[0].mxu0
    %v1243 = vadd.f32 %v1170, %v1242
    %v1244 = vpop.f32.mrb[0].mxu0
    %1245 = vmatprep.mubr.f32.mxu0 %v127
    %1246 = vmatmul.mubr.f32.gmra.mrb[0].mxu0 %v1129
    %v1247 = vpop.f32.mrb[0].mxu0
    %v1248 = vadd.f32 %v1170, %v1247
    %v1249 = vpop.f32.mrb[0].mxu0
    %1250 = vmatprep.mubr.f32.mxu0 %v128
    %1251 = vmatmul.mubr.f32.gmra.mrb[0].mxu0 %v1130
    %v1252 = vpop.f32.mrb[0].mxu0
    %v1253 = vadd.f32 %v1170, %v1252
    %v1254 = vpop.f32.mrb[0].mxu0
    %1255 = vmatprep.mubr.f32.mxu0 %v129
    %1256 = vmatmul.mubr.f32.gmra.mrb[0].mxu0 %v1131
    %v1257 = vpop.f32.mrb[0].mxu0
    %v1258 = vadd.f32 %v1170, %v1257
    %v1259 = vpop.f32.mrb[0].mxu0
    %1260 = vmatprep.mubr.f32.mxu0 %v130
    %1261 = vmatmul.mubr.f32.gmra.mrb[0].mxu0 %v1132
    %v1262 = vpop.f32.mrb[0].mxu0
    %v1263 = vadd.f32 %v1170, %v1262
    %v1264 = vpop.f32.mrb[0].mxu0
    %1265 = vmatprep.mubr.f32.mxu0 %v131
    %1266 = vmatmul.mubr.f32.gmra.mrb[0].mxu0 %v1133
    %v1267 = vpop.f32.mrb[0].mxu0
    %v1268 = vadd.f32 %v1170, %v1267
    %v1269 = vpop.f32.mrb[0].mxu0
    %1270 = vmatprep.mubr.f32.mxu0 %v132
    %1271 = vmatmul.mubr.f32.gmra.mrb[0].mxu0 %v1134
    %v1272 = vpop.f32.mrb[0].mxu0
    %v1273 = vadd.f32 %v1170, %v1272
    %v1274 = vpop.f32.mrb[0].mxu0
    %1275 = vdwg.mxu0
    %1276 = vst [vmem:[#allocation14] sm:$0xff] %v1238
    %1277 = vst [vmem:[#allocation14 + $0x8] sm:$0xff] %v1243
    %1278 = vst [vmem:[#allocation14 + $0x10] sm:$0xff] %v1248
    %1279 = vst [vmem:[#allocation14 + $0x18] sm:$0xff] %v1253
    %1280 = vst [vmem:[#allocation14 + $0x20] sm:$0xff] %v1258
    %1281 = vst [vmem:[#allocation14 + $0x28] sm:$0xff] %v1263
    %1282 = vst [vmem:[#allocation14 + $0x30] sm:$0xff] %v1268
    %1283 = vst [vmem:[#allocation14 + $0x38] sm:$0xff] %v1273
    // Predicated region
    $region62: #{tpu_custom_call.1} parent=1 // pred_check
      _
    $region63: #{tpu_custom_call.1} parent=1 // pred_check_branch
      %1285 = sbr.rel (0) target = $region65
    $region64: #{tpu_custom_call.1} parent=1 // pred_region
      %s1287 = ssub.s32 1024, 1024
      %1288 = vsyncadd [#allocation4], %s1287
      %s1289 = sshll.u32 [#allocation14], 4
      %s1290 = int_to_ptr.vmem [resolvable:$true] %s1289
      %1295 = dma.vmem_to_hbm [thread:$0]  %s1290, 1024, %s8, [#allocation4], 128, 128, 8
    $region65: #{tpu_custom_call.1} parent=1 // pred_fallthru
      _
    // Predicated region
    $region66: #{tpu_custom_call.1} parent=1 // pred_check
      _
    $region67: #{tpu_custom_call.1} parent=1 // pred_check_branch
      %1297 = sbr.rel (0) target = $region69
    $region68: #{tpu_custom_call.1} parent=1 // pred_region
      %1298 = dma.done [#allocation4], 1024
    $region69: #{tpu_custom_call.1} parent=1 // pred_fallthru
      _
    %1299 = vsyncpa [#allocation3], 1
    %1300 = vsyncpa [#allocation6], 1
    %1301 = vsyncpa [#allocation9], 1
    %1302 = vsyncpa [#allocation12], 1
    %1303 = vsyncpa [#allocation4], 1

</llo_original>
